<compile_context>
chip_gen: v7x
topology: tpu7x:2x2x1
jax: 0.10.0
libtpu: 0.0.40
codegen_flags: <defaults>
</compile_context>

<pallas_src>
from functools import lru_cache, partial

import jax
import jax.numpy as jnp
from jax.experimental import pallas as pl
from jax.experimental.pallas import tpu as pltpu

# ---- module hyper-parameters (args) -----------------------------------------
UNFOLD_KERNEL_SIZE = 3   # args.unfold_kernel_size
STRIDE = 1               # args.stride
PADDING = 1              # args.padding
TOP_K = 2                # args.top_k


def _round_up(x, m):
    return (x + m - 1) // m * m


# ---- plain-JAX glue: unfold / fold (im2col and its adjoint) ------------------
def unfold(x, k, stride, pad):
    """F.unfold equivalent: (B, C, H, W) -> (B, C*k*k, L)."""
    B, C, H, W = x.shape
    xp = jnp.pad(x, ((0, 0), (0, 0), (pad, pad), (pad, pad)))
    Lh = (H + 2 * pad - k) // stride + 1
    Lw = (W + 2 * pad - k) // stride + 1
    cols = []
    for ki in range(k):
        for kj in range(k):
            patch = xp[:, :, ki:ki + stride * Lh:stride, kj:kj + stride * Lw:stride]
            cols.append(patch.reshape(B, C, Lh * Lw))
    out = jnp.stack(cols, axis=2)                 # (B, C, k*k, L)
    return out.reshape(B, C * k * k, Lh * Lw)


def fold(cols, C, out_h, out_w, k, stride, pad):
    """F.fold equivalent (scatter-add adjoint of unfold)."""
    # TODO(synk): fold is a scatter-add; kept in plain JAX (no clean Pallas gather/scatter path here).
    B = cols.shape[0]
    Lh = (out_h + 2 * pad - k) // stride + 1
    Lw = (out_w + 2 * pad - k) // stride + 1
    p = cols.reshape(B, C, k, k, Lh, Lw)
    out = jnp.zeros((B, C, out_h + 2 * pad, out_w + 2 * pad), cols.dtype)
    for ki in range(k):
        for kj in range(k):
            out = out.at[:, :, ki:ki + stride * Lh:stride,
                         kj:kj + stride * Lw:stride].add(p[:, :, ki, kj])
    return out[:, :, pad:pad + out_h, pad:pad + out_w]


# ---- single-buffered K probe --------------------------------------------------
@lru_cache(maxsize=None)
def _single_buffer_supported():
    """Probe whether pipeline_mode=pl.Buffered(1) lowers on this backend."""
    try:
        def _probe(a_ref, b_ref, o_ref):
            o_ref[...] = a_ref[...] + b_ref[...]

        const_spec = pl.BlockSpec((None, 8, 128), lambda b, j: (b, 0, 0),
                                  pipeline_mode=pl.Buffered(1))
        var_spec = pl.BlockSpec((None, 8, 128), lambda b, j: (b, 0, j))
        f = pl.pallas_call(
            _probe,
            out_shape=jax.ShapeDtypeStruct((2, 8, 256), jnp.float32),
            grid_spec=pltpu.PrefetchScalarGridSpec(
                num_scalar_prefetch=0, grid=(2, 2),
                in_specs=[const_spec, var_spec],
                out_specs=var_spec),
        )
        jax.jit(f).lower(jax.ShapeDtypeStruct((2, 8, 256), jnp.float32),
                         jax.ShapeDtypeStruct((2, 8, 256), jnp.float32)).compile()
        return True
    except Exception:  # noqa: BLE001 - any failure -> fall back to default buffering
        return False


# ---- Pallas kernels ----------------------------------------------------------
def _corr_argmax_kernel(k_ref, q_ref, h_ref, *, n_valid, n_pad):
    """H[j] = argmax_i <kn[:, i], qn[:, j]> for this query-column tile."""
    kb = k_ref[...]                                              # (Dp, Np) bf16 resident
    qb = q_ref[...]                                              # (Dp, TQ) bf16 streamed
    r = jax.lax.dot_general(kb, qb, (((0,), (0,)), ((), ())),
                            preferred_element_type=jnp.float32)  # (Np, TQ) f32 acc
    np_, _ = r.shape
    row_ids = jax.lax.broadcasted_iota(jnp.int32, (np_, 1), 0)   # (Np, 1), broadcast below
    if n_valid < n_pad:                                          # static: only if padded rows exist
        r = jnp.where(row_ids < n_valid, r, -jnp.inf)
    mx = jnp.max(r, axis=0, keepdims=True)                       # (1, TQ)
    cand = jnp.where(r == mx, row_ids, np_)                      # first-occurrence tie-break
    h_ref[...] = jnp.min(cand, axis=0, keepdims=True)            # (1, TQ) int32


def _corr_topk_kernel(k_ref, q_ref, s_ref, i_ref, *, n_valid, n_pad, top_k):
    """R2[jp, j] = <kn[:, H[jp]], qn[:, j]>; top-k over jp per column of this tile."""
    kb = k_ref[...]                                              # (Dp, Np) bf16 = gathered kn
    qb = q_ref[...]                                              # (Dp, TQ) bf16
    r = jax.lax.dot_general(kb, qb, (((0,), (0,)), ((), ())),
                            preferred_element_type=jnp.float32)  # (Np, TQ)
    np_, _ = r.shape
    row_ids = jax.lax.broadcasted_iota(jnp.int32, (np_, 1), 0)   # (Np, 1), broadcast below
    work = r
    if n_valid < n_pad:                                          # static: only if padded rows exist
        work = jnp.where(row_ids < n_valid, work, -jnp.inf)
    for t in range(top_k):
        mx = jnp.max(work, axis=0, keepdims=True)                # (1, TQ)
        cand = jnp.where(work == mx, row_ids, np_)
        idx = jnp.min(cand, axis=0, keepdims=True)               # (1, TQ) int32
        s_ref[t:t + 1, :] = mx                                   # f32 accumulator values
        i_ref[t:t + 1, :] = idx
        if t + 1 < top_k:
            work = jnp.where(row_ids == idx, -jnp.inf, work)


def _normalize_cols(x, eps=1e-12):
    """F.normalize over the feature (D) axis: x / max(||x||_2, eps), via rsqrt."""
    ss = jnp.sum(x * x, axis=1, keepdims=True)
    return x * jax.lax.rsqrt(jnp.maximum(ss, eps * eps))


def search_pallas(q_unf, k_unf, top_k):
    """q_unf, k_unf: (B, D, N) -> (H (B,N) i32, S (B,top_k,N) f32, Hk (B,top_k,N) i32)."""
    B, D, N = q_unf.shape
    # Normalize in f32, cast to bf16 in the wrapper (halves DMA + resident K VMEM).
    qn = _normalize_cols(q_unf.astype(jnp.float32)).astype(jnp.bfloat16)
    kn = _normalize_cols(k_unf.astype(jnp.float32)).astype(jnp.bfloat16)

    Dp = _round_up(D, 16)                       # bf16 sublane-pack aligned contraction depth
    Np = _round_up(N, 128)                      # lane-dense patch axis
    if Np % 512 == 0:
        TQ = 512                                # amortize per-step overhead / MXU ramp
    elif Np % 256 == 0:
        TQ = 256
    else:
        TQ = 128

    def pad3(x):
        return jnp.pad(x, ((0, 0), (0, Dp - x.shape[1]), (0, Np - x.shape[2])))

    qn_p = pad3(qn)                             # (B, Dp, Np) bf16
    kn_p = pad3(kn)                             # (B, Dp, Np) bf16

    grid = (B, Np // TQ)
    # Keep the batch axis "parallel" when B >= 2 so each TensorCore streams its own
    # batches (one resident-K DMA per batch per core) instead of splitting jt.
    dims = ("parallel", "arbitrary") if B >= 2 else ("arbitrary", "parallel")

    # VMEM budget: resident K (+ fallback double-buffer), double-buffered Q tile,
    # (Np, TQ) f32 correlation intermediate, small outputs, headroom.
    k_bytes = Dp * Np * 2
    q_bytes = Dp * TQ * 2
    corr_bytes = Np * TQ * 4
    out_bytes = 2 * (1 + top_k) * TQ * 8
    vmem_need = 2 * k_bytes + 2 * q_bytes + 3 * corr_bytes + out_bytes + (2 << 20)
    vmem_limit = int(min(max(vmem_need, 16 << 20), 48 << 20))

    cparams = pltpu.CompilerParams(dimension_semantics=dims,
                                   vmem_limit_bytes=vmem_limit)

    # Resident K block: single-buffer when supported (its block index is constant
    # across the jt axis; only changes per batch).
    if _single_buffer_supported():
        k_spec = pl.BlockSpec((None, Dp, Np), lambda b, jt: (b, 0, 0),
                              pipeline_mode=pl.Buffered(1))
    else:
        k_spec = pl.BlockSpec((None, Dp, Np), lambda b, jt: (b, 0, 0))
    q_spec = pl.BlockSpec((None, Dp, TQ), lambda b, jt: (b, 0, jt))  # streamed column tile

    flops_total = 2 * B * Dp * Np * Np
    bytes_p1 = B * (2 * k_bytes * 0 + Dp * Np * 2 + Dp * Np * 2 + Np * 4)
    bytes_p2 = B * (Dp * Np * 2 + Dp * Np * 2 + top_k * Np * (4 + 4))
    ce1 = pl.CostEstimate(flops=flops_total, transcendentals=0, bytes_accessed=bytes_p1)
    ce2 = pl.CostEstimate(flops=flops_total, transcendentals=0, bytes_accessed=bytes_p2)

    # ---- phase 1: hard index H[j] = argmax_i cos(K_i, Q_j) -------------------
    h_pad = pl.pallas_call(
        partial(_corr_argmax_kernel, n_valid=N, n_pad=Np),
        out_shape=jax.ShapeDtypeStruct((B, 1, Np), jnp.int32),
        grid_spec=pltpu.PrefetchScalarGridSpec(
            num_scalar_prefetch=0, grid=grid,
            in_specs=[k_spec, q_spec],
            out_specs=pl.BlockSpec((None, 1, TQ), lambda b, jt: (b, 0, jt)),
        ),
        compiler_params=cparams,
        cost_estimate=ce1,
    )(kn_p, qn_p)
    H = h_pad[:, 0, :N]                                             # (B, N) int32

    # ---- column gather of the padded bf16 K by H (plain JAX), re-pad N only --
    kn_sel = jnp.take_along_axis(kn_p, jnp.broadcast_to(H[:, None, :], (B, Dp, N)), axis=2)
    kn_sel_p = jnp.pad(kn_sel, ((0, 0), (0, 0), (0, Np - N)))       # (B, Dp, Np) bf16

    # ---- phase 2: R2 = kn_sel^T @ qn, top-k over rows per column -------------
    S_pad, Hk_pad = pl.pallas_call(
        partial(_corr_topk_kernel, n_valid=N, n_pad=Np, top_k=top_k),
        out_shape=(jax.ShapeDtypeStruct((B, top_k, Np), jnp.float32),
                   jax.ShapeDtypeStruct((B, top_k, Np), jnp.int32)),
        grid_spec=pltpu.PrefetchScalarGridSpec(
            num_scalar_prefetch=0, grid=grid,
            in_specs=[k_spec, q_spec],
            out_specs=(pl.BlockSpec((None, top_k, TQ), lambda b, jt: (b, 0, jt)),
                       pl.BlockSpec((None, top_k, TQ), lambda b, jt: (b, 0, jt))),
        ),
        compiler_params=cparams,
        cost_estimate=ce2,
    )(kn_sel_p, qn_p)

    return H, S_pad[:, :, :N], Hk_pad[:, :, :N]


# ---- SearchTransfer forward ---------------------------------------------------
class SearchTransferPallas:
    def __init__(self, unfold_kernel_size, stride, padding, top_k):
        self.k3, self.s3, self.p3 = unfold_kernel_size, stride, padding
        self.k2, self.s2, self.p2 = 2 * self.k3, 2 * self.s3, 2 * self.p3
        self.k1, self.s1, self.p1 = 4 * self.k3, 4 * self.s3, 4 * self.p3
        self.top_k = top_k

    def __call__(self, lr_lv3, refsr_lv3, ref_lv1, ref_lv2, ref_lv3):
        x, y = lr_lv3[2], refsr_lv3[2]
        B, C, h, w = x.shape

        # Search(): the reference uses stride == padding for the Q/K unfolds.
        Q = unfold(x, self.k3, self.p3, self.p3)
        K = unfold(y, self.k3, self.p3, self.p3)
        H, S__, H__ = search_pallas(Q, K, self.top_k)            # (B,N), (B,k,N), (B,k,N)
        N = Q.shape[2]
        # S reshape below requires N == (h/stride)*(w/stride) (true for k=3,s=1,p=1 geometry)
        assert N == (h // self.s3) * (w // self.s3), "N mismatch for soft-score reshape"

        V3 = unfold(ref_lv3, self.k3, self.s3, self.p3)
        V2 = unfold(ref_lv2, self.k2, self.s2, self.p2)
        V1 = unfold(ref_lv1, self.k1, self.s1, self.p1)

        def gather(v, idx):
            return jnp.take_along_axis(v, jnp.broadcast_to(idx[:, None, :], v.shape), axis=2)

        T3u = gather(V3, H)
        T2u = gather(V2, H)
        T1u = gather(V1, H)

        # divisors (fold of ones) depend only on geometry -> compute once, broadcast
        div3 = fold(jnp.ones((1, self.k3 * self.k3, N), jnp.float32), 1, h, w,
                    self.k3, self.s3, self.p3)
        div2 = fold(jnp.ones((1, self.k2 * self.k2, N), jnp.float32), 1, 2 * h, 2 * w,
                    self.k2, self.s2, self.p2)
        div1 = fold(jnp.ones((1, self.k1 * self.k1, N), jnp.float32), 1, 4 * h, 4 * w,
                    self.k1, self.s1, self.p1)

        S_list, T3_list, T2_list, T1_list = [], [], [], []
        for i in range(self.top_k):
            Hi = H__[:, i, :]
            g3 = gather(T3u, Hi)
            g2 = gather(T2u, Hi)
            g1 = gather(T1u, Hi)
            T3_list.append(fold(g3, C, h, w, self.k3, self.s3, self.p3) / div3)
            T2_list.append(fold(g2, C, 2 * h, 2 * w, self.k2, self.s2, self.p2) / div2)
            T1_list.append(fold(g1, C, 4 * h, 4 * w, self.k1, self.s1, self.p1) / div1)
            S_list.append(S__[:, i, :].reshape(B, 1, h // self.s3, w // self.s3))
        return S_list, T3_list, T2_list, T1_list


if __name__ == "__main__":
    B, C, h, w = 2, 4, 16, 16
    key = jax.random.PRNGKey(0)
    k1, k2, k3, k4, k5 = jax.random.split(key, 5)
    lr3 = jax.random.normal(k1, (B, C, h, w), jnp.float32)
    refsr3 = jax.random.normal(k2, (B, C, h, w), jnp.float32)
    ref_lv3 = jax.random.normal(k3, (B, C, h, w), jnp.float32)
    ref_lv2 = jax.random.normal(k4, (B, C, 2 * h, 2 * w), jnp.float32)
    ref_lv1 = jax.random.normal(k5, (B, C, 4 * h, 4 * w), jnp.float32)

    model = SearchTransferPallas(UNFOLD_KERNEL_SIZE, STRIDE, PADDING, TOP_K)

    @jax.jit
    def run(a, b, r1, r2, r3):
        # lr_lv3 / refsr_lv3 are 3-level pyramids; the forward only uses index [2]
        return model((a, a, a), (b, b, b), r1, r2, r3)

    S, T_lv3, T_lv2, T_lv1 = run(lr3, refsr3, ref_lv1, ref_lv2, ref_lv3)
    jax.block_until_ready((S, T_lv3, T_lv2, T_lv1))

    assert len(S) == TOP_K and len(T_lv3) == TOP_K and len(T_lv2) == TOP_K and len(T_lv1) == TOP_K
    assert S[0].shape == (B, 1, h, w)
    assert T_lv3[0].shape == (B, C, h, w)
    assert T_lv2[0].shape == (B, C, 2 * h, 2 * w)
    assert T_lv1[0].shape == (B, C, 4 * h, 4 * w)
    assert all(bool(jnp.all(jnp.isfinite(t))) for t in (S[0], T_lv3[0], T_lv2[0], T_lv1[0]))
    print("KERNEL_OK")
</pallas_src>

<mosaic_0001>
module attributes {stable_mosaic.version = 11 : i64} {
  func.func private @main(%arg0: i32) attributes {dimension_semantics = [#tpu.dimension_semantics<core_parallel>], iteration_bounds = array<i64: 2>, tpu.core_type = #tpu.core_type<sc_scalar_subcore>, window_params = []} {
    return
  }
}

module attributes {stable_mosaic.version = 11 : i64} {
  func.func private @main(%arg0: i32) attributes {dimension_semantics = [#tpu.dimension_semantics<core_parallel>], iteration_bounds = array<i64: 2>, tpu.core_type = #tpu.core_type<sc_scalar_subcore>, window_params = []} {
    return
  }
}

module attributes {stable_mosaic.version = 11 : i64} {
  func.func @_corr_argmax_kernel(%arg0: i32, %arg1: i32, %arg2: memref<1x48x256xbf16, #tpu.memory_space<vmem>>, %arg3: memref<1x48x256xbf16, #tpu.memory_space<vmem>>, %arg4: memref<1x1x256xi32, #tpu.memory_space<vmem>>) attributes {dimension_semantics = [#tpu.dimension_semantics<parallel>, #tpu.dimension_semantics<arbitrary>], iteration_bounds = array<i64: 2, 1>, scalar_prefetch = 0 : i64, scratch_operands = 0 : i64, tpu.core_type = #tpu.core_type<tc>, window_params = [{transform_indices = @transform_0, window_bounds = array<i64: 1, 48, 256>}, {transform_indices = @transform_1, window_bounds = array<i64: 1, 48, 256>}, {transform_indices = @transform_2, window_bounds = array<i64: 1, 1, 256>}]} {
    %c0 = arith.constant 0 : index
    %c0_0 = arith.constant 0 : index
    %c0_1 = arith.constant 0 : index
    %0 = vector.load %arg2[%c0, %c0_0, %c0_1] : memref<1x48x256xbf16, #tpu.memory_space<vmem>>, vector<1x48x256xbf16>
    %1 = vector.shape_cast %0 : vector<1x48x256xbf16> to vector<48x256xbf16>
    %c0_2 = arith.constant 0 : index
    %c0_3 = arith.constant 0 : index
    %c0_4 = arith.constant 0 : index
    %2 = vector.load %arg3[%c0_2, %c0_3, %c0_4] : memref<1x48x256xbf16, #tpu.memory_space<vmem>>, vector<1x48x256xbf16>
    %3 = vector.shape_cast %2 : vector<1x48x256xbf16> to vector<48x256xbf16>
    %cst = arith.constant dense<0.000000e+00> : vector<256x256xf32>
    %4 = tpu.matmul %1, %3, %cst {dimension_numbers = #tpu.dot_dimension_numbers<[0], [0], [1], [1], [0, 1, 1, 1], [], []>} : vector<48x256xbf16>, vector<48x256xbf16>, vector<256x256xf32> -> vector<256x256xf32>
    %5 = tpu.iota {dimensions = array<i32: 0>} : vector<256x1xi32>
    %cst_5 = arith.constant dense<0xFF800000> : vector<256xf32>
    %6 = vector.multi_reduction <maximumf>, %4, %cst_5 [0] : vector<256x256xf32> to vector<256xf32>
    %7 = vector.shape_cast %6 : vector<256xf32> to vector<1x256xf32>
    %8 = vector.broadcast %7 : vector<1x256xf32> to vector<256x256xf32>
    %9 = arith.cmpf oeq, %4, %8 : vector<256x256xf32>
    %c256_i32 = arith.constant 256 : i32
    %10 = vector.shape_cast %5 : vector<256x1xi32> to vector<256x1xi32>
    %11 = vector.broadcast %10 : vector<256x1xi32> to vector<256x256xi32>
    %12 = vector.broadcast %c256_i32 : i32 to vector<256x256xi32>
    %13 = arith.select %9, %11, %12 : vector<256x256xi1>, vector<256x256xi32>
    %cst_6 = arith.constant dense<2147483647> : vector<256xi32>
    %14 = vector.multi_reduction <minsi>, %13, %cst_6 [0] : vector<256x256xi32> to vector<256xi32>
    %15 = vector.shape_cast %14 : vector<256xi32> to vector<1x256xi32>
    %c0_7 = arith.constant 0 : index
    %c0_8 = arith.constant 0 : index
    %c0_9 = arith.constant 0 : index
    %16 = vector.load %arg4[%c0_7, %c0_8, %c0_9] : memref<1x1x256xi32, #tpu.memory_space<vmem>>, vector<1x1x256xi32>
    %17 = vector.shape_cast %16 : vector<1x1x256xi32> to vector<1x256xi32>
    %18 = vector.shape_cast %15 : vector<1x256xi32> to vector<1x1x256xi32>
    tpu.vector_store %arg4[%c0_7, %c0_8, %c0_9], %18 {strides = array<i32>} : memref<1x1x256xi32, #tpu.memory_space<vmem>>, vector<1x1x256xi32>,
    return
  }
  func.func @transform_0(%arg0: i32, %arg1: i32) -> (i32, i32, i32) {
    %c0_i32 = arith.constant 0 : i32
    %c0_i32_0 = arith.constant 0 : i32
    %c0_i32_1 = arith.constant 0 : i32
    return %arg0, %c0_i32, %c0_i32_0 : i32, i32, i32
  }
  func.func @transform_1(%arg0: i32, %arg1: i32) -> (i32, i32, i32) {
    %c0_i32 = arith.constant 0 : i32
    %c0_i32_0 = arith.constant 0 : i32
    return %arg0, %c0_i32, %arg1 : i32, i32, i32
  }
  func.func @transform_2(%arg0: i32, %arg1: i32) -> (i32, i32, i32) {
    %c0_i32 = arith.constant 0 : i32
    %c0_i32_0 = arith.constant 0 : i32
    return %arg0, %c0_i32, %arg1 : i32, i32, i32
  }
}

module attributes {stable_mosaic.version = 11 : i64} {
  func.func @_corr_topk_kernel(%arg0: i32, %arg1: i32, %arg2: memref<1x48x256xbf16, #tpu.memory_space<vmem>>, %arg3: memref<1x48x256xbf16, #tpu.memory_space<vmem>>, %arg4: memref<1x2x256xf32, #tpu.memory_space<vmem>>, %arg5: memref<1x2x256xi32, #tpu.memory_space<vmem>>) attributes {dimension_semantics = [#tpu.dimension_semantics<parallel>, #tpu.dimension_semantics<arbitrary>], iteration_bounds = array<i64: 2, 1>, scalar_prefetch = 0 : i64, scratch_operands = 0 : i64, tpu.core_type = #tpu.core_type<tc>, window_params = [{transform_indices = @transform_0, window_bounds = array<i64: 1, 48, 256>}, {transform_indices = @transform_1, window_bounds = array<i64: 1, 48, 256>}, {transform_indices = @transform_2, window_bounds = array<i64: 1, 2, 256>}, {transform_indices = @transform_3, window_bounds = array<i64: 1, 2, 256>}]} {
    %c0 = arith.constant 0 : index
    %c0_0 = arith.constant 0 : index
    %c0_1 = arith.constant 0 : index
    %0 = vector.load %arg2[%c0, %c0_0, %c0_1] : memref<1x48x256xbf16, #tpu.memory_space<vmem>>, vector<1x48x256xbf16>
    %1 = vector.shape_cast %0 : vector<1x48x256xbf16> to vector<48x256xbf16>
    %c0_2 = arith.constant 0 : index
    %c0_3 = arith.constant 0 : index
    %c0_4 = arith.constant 0 : index
    %2 = vector.load %arg3[%c0_2, %c0_3, %c0_4] : memref<1x48x256xbf16, #tpu.memory_space<vmem>>, vector<1x48x256xbf16>
    %3 = vector.shape_cast %2 : vector<1x48x256xbf16> to vector<48x256xbf16>
    %cst = arith.constant dense<0.000000e+00> : vector<256x256xf32>
    %4 = tpu.matmul %1, %3, %cst {dimension_numbers = #tpu.dot_dimension_numbers<[0], [0], [1], [1], [0, 1, 1, 1], [], []>} : vector<48x256xbf16>, vector<48x256xbf16>, vector<256x256xf32> -> vector<256x256xf32>
    %5 = tpu.iota {dimensions = array<i32: 0>} : vector<256x1xi32>
    %cst_5 = arith.constant dense<0xFF800000> : vector<256xf32>
    %6 = vector.multi_reduction <maximumf>, %4, %cst_5 [0] : vector<256x256xf32> to vector<256xf32>
    %7 = vector.shape_cast %6 : vector<256xf32> to vector<1x256xf32>
    %8 = vector.broadcast %7 : vector<1x256xf32> to vector<256x256xf32>
    %9 = arith.cmpf oeq, %4, %8 : vector<256x256xf32>
    %c256_i32 = arith.constant 256 : i32
    %10 = vector.shape_cast %5 : vector<256x1xi32> to vector<256x1xi32>
    %11 = vector.broadcast %10 : vector<256x1xi32> to vector<256x256xi32>
    %12 = vector.broadcast %c256_i32 : i32 to vector<256x256xi32>
    %13 = arith.select %9, %11, %12 : vector<256x256xi1>, vector<256x256xi32>
    %cst_6 = arith.constant dense<2147483647> : vector<256xi32>
    %14 = vector.multi_reduction <minsi>, %13, %cst_6 [0] : vector<256x256xi32> to vector<256xi32>
    %15 = vector.shape_cast %14 : vector<256xi32> to vector<1x256xi32>
    %c0_7 = arith.constant 0 : index
    %c0_8 = arith.constant 0 : index
    %c0_9 = arith.constant 0 : index
    %16 = vector.load %arg4[%c0_7, %c0_8, %c0_9] : memref<1x2x256xf32, #tpu.memory_space<vmem>>, vector<1x1x256xf32>
    %17 = vector.shape_cast %16 : vector<1x1x256xf32> to vector<1x256xf32>
    %18 = vector.shape_cast %7 : vector<1x256xf32> to vector<1x1x256xf32>
    tpu.vector_store %arg4[%c0_7, %c0_8, %c0_9], %18 {strides = array<i32>} : memref<1x2x256xf32, #tpu.memory_space<vmem>>, vector<1x1x256xf32>,
    %c0_10 = arith.constant 0 : index
    %c0_11 = arith.constant 0 : index
    %c0_12 = arith.constant 0 : index
    %19 = vector.load %arg5[%c0_10, %c0_11, %c0_12] : memref<1x2x256xi32, #tpu.memory_space<vmem>>, vector<1x1x256xi32>
    %20 = vector.shape_cast %19 : vector<1x1x256xi32> to vector<1x256xi32>
    %21 = vector.shape_cast %15 : vector<1x256xi32> to vector<1x1x256xi32>
    tpu.vector_store %arg5[%c0_10, %c0_11, %c0_12], %21 {strides = array<i32>} : memref<1x2x256xi32, #tpu.memory_space<vmem>>, vector<1x1x256xi32>,
    %22 = vector.broadcast %5 : vector<256x1xi32> to vector<256x256xi32>
    %23 = vector.broadcast %15 : vector<1x256xi32> to vector<256x256xi32>
    %24 = arith.cmpi eq, %22, %23 : vector<256x256xi32>
    %cst_13 = arith.constant 0xFF800000 : f32
    %25 = vector.broadcast %cst_13 : f32 to vector<256x256xf32>
    %26 = arith.select %24, %25, %4 : vector<256x256xi1>, vector<256x256xf32>
    %cst_14 = arith.constant dense<0xFF800000> : vector<256xf32>
    %27 = vector.multi_reduction <maximumf>, %26, %cst_14 [0] : vector<256x256xf32> to vector<256xf32>
    %28 = vector.shape_cast %27 : vector<256xf32> to vector<1x256xf32>
    %29 = vector.broadcast %28 : vector<1x256xf32> to vector<256x256xf32>
    %30 = arith.cmpf oeq, %26, %29 : vector<256x256xf32>
    %c256_i32_15 = arith.constant 256 : i32
    %31 = vector.shape_cast %5 : vector<256x1xi32> to vector<256x1xi32>
    %32 = vector.broadcast %31 : vector<256x1xi32> to vector<256x256xi32>
    %33 = vector.broadcast %c256_i32_15 : i32 to vector<256x256xi32>
    %34 = arith.select %30, %32, %33 : vector<256x256xi1>, vector<256x256xi32>
    %cst_16 = arith.constant dense<2147483647> : vector<256xi32>
    %35 = vector.multi_reduction <minsi>, %34, %cst_16 [0] : vector<256x256xi32> to vector<256xi32>
    %36 = vector.shape_cast %35 : vector<256xi32> to vector<1x256xi32>
    %c0_17 = arith.constant 0 : index
    %c1 = arith.constant 1 : index
    %c0_18 = arith.constant 0 : index
    %37 = vector.load %arg4[%c0_17, %c1, %c0_18] : memref<1x2x256xf32, #tpu.memory_space<vmem>>, vector<1x1x256xf32>
    %38 = vector.shape_cast %37 : vector<1x1x256xf32> to vector<1x256xf32>
    %39 = vector.shape_cast %28 : vector<1x256xf32> to vector<1x1x256xf32>
    tpu.vector_store %arg4[%c0_17, %c1, %c0_18], %39 {strides = array<i32>} : memref<1x2x256xf32, #tpu.memory_space<vmem>>, vector<1x1x256xf32>,
    %c0_19 = arith.constant 0 : index
    %c1_20 = arith.constant 1 : index
    %c0_21 = arith.constant 0 : index
    %40 = vector.load %arg5[%c0_19, %c1_20, %c0_21] : memref<1x2x256xi32, #tpu.memory_space<vmem>>, vector<1x1x256xi32>
    %41 = vector.shape_cast %40 : vector<1x1x256xi32> to vector<1x256xi32>
    %42 = vector.shape_cast %36 : vector<1x256xi32> to vector<1x1x256xi32>
    tpu.vector_store %arg5[%c0_19, %c1_20, %c0_21], %42 {strides = array<i32>} : memref<1x2x256xi32, #tpu.memory_space<vmem>>, vector<1x1x256xi32>,
    return
  }
  func.func @transform_0(%arg0: i32, %arg1: i32) -> (i32, i32, i32) {
    %c0_i32 = arith.constant 0 : i32
    %c0_i32_0 = arith.constant 0 : i32
    %c0_i32_1 = arith.constant 0 : i32
    return %arg0, %c0_i32, %c0_i32_0 : i32, i32, i32
  }
  func.func @transform_1(%arg0: i32, %arg1: i32) -> (i32, i32, i32) {
    %c0_i32 = arith.constant 0 : i32
    %c0_i32_0 = arith.constant 0 : i32
    return %arg0, %c0_i32, %arg1 : i32, i32, i32
  }
  func.func @transform_2(%arg0: i32, %arg1: i32) -> (i32, i32, i32) {
    %c0_i32 = arith.constant 0 : i32
    %c0_i32_0 = arith.constant 0 : i32
    return %arg0, %c0_i32, %arg1 : i32, i32, i32
  }
  func.func @transform_3(%arg0: i32, %arg1: i32) -> (i32, i32, i32) {
    %c0_i32 = arith.constant 0 : i32
    %c0_i32_0 = arith.constant 0 : i32
    return %arg0, %c0_i32, %arg1 : i32, i32, i32
  }
}

</mosaic_0001>

<llo_original>
// kernel: run.2
$region0: #{run.2}
  #allocation0 [shape = 'u32[]', space=smem, size = 0x4, offset = 0x4, fixed_abs, tag = 'smem constant byte address 0x4 - core index']
  #allocation1 [shape = 'u32[144,128]{1,0:T(1,128)}', space=vmem, size = 0x12000, scoped, tag = 'internal scratch']
  %s0 = inlined_call_operand.vmem [shape: bf16[2,48,256], index: 0, kind: input, shape index: {}]
  %s1 = inlined_call_operand.vmem [shape: bf16[2,48,256], index: 1, kind: input, shape index: {}]
  %s2 = inlined_call_operand.vmem [shape: s32[2,1,256], index: 2, kind: output, shape index: {}]
  %s3 = sld [smem:[#allocation0]]
  $region41: #{run.2} parent=0
    _
  %s5 = ssub.s32 1, %s3
  %s6 = scalar_select 0, %s5, %s3
  loop: start=0, step=1, limit=4
  $region2: #{run.2} parent=0 // loop_pre_header
    _
  $region3: #{run.2} parent=0 // loop_header
    %s8 = sphi 0, %s12
    %p9 = scmp.ge.s32.totalorder %s8, 4
    %s15 = sphi 0, %s27
    %s16 = sphi 0, %s23
    %s17 = sphi 0, %s15
    %s18 = sphi 0, %s16
    %s19 = sphi 0, %s17
    %s20 = sphi 0, %s18
    %s30 = sphi 0, %s32
    %s33 = sphi 0, %s30
    %s34 = sphi 0, %s33
    %s50 = sphi 0, %s34
    %s58 = sphi 0, %s60
    %s61 = sphi 0, %s58
    %s62 = sphi 0, %s61
    %s78 = sphi 0, %s62
    %s86 = sphi 0, %s88
    %s89 = sphi 0, %s86
    %s90 = sphi 0, %s89
    %s106 = sphi 0, %s90
  $region4: #{run.2} parent=0 // loop_header_branch
    %11 = sbr.rel (%p9) target = $region8
  $region5: #{run.2} parent=0 // loop_body
    %s13 = ssub.s32 %s8, 1
    %s14 = ssub.s32 %s8, 2
    %s21 = sadd.s32 1, %s16
    %p22 = scmp.ge.s32.totalorder %s21, 1
    %s23 = scalar_select %p22, 0, %s21
    %s24 = sadd.s32 1, %s15
    %s25 = scalar_select %p22, %s24, %s15
    %p26 = scmp.ge.s32.totalorder %s25, 2
    %s27 = scalar_select %p26, 0, %s25
    %s28 = ssub.s32 %s15, %s27
    %p29 = scmp.eq.s32.totalorder %s28, 0
    %s31 = sadd.s32 %s30, 1
    %s32 = scalar_select %p29, %s30, %s31
    %p35 = pneg %p29
    %p36 = scmp.eq.s32.totalorder %s8, 1
    %p37 = por %p35, %p36
    %p38 = scmp.ne.s32.totalorder %s30, %s33
    %p39 = scmp.eq.s32.totalorder %s8, 0
    %p40 = por %p38, %p39
    %p41 = scmp.ne.s32.totalorder %s30, %s33
    %p42 = scmp.eq.s32.totalorder %s13, 1
    %p43 = por %p41, %p42
    %p44 = scmp.ne.s32.totalorder %s33, %s34
    %p45 = scmp.eq.s32.totalorder %s13, 0
    %p46 = por %p44, %p45
    %p47 = scmp.ne.s32.totalorder %s33, %s34
    %p48 = scmp.eq.s32.totalorder %s14, 1
    %p49 = por %p47, %p48
    %p51 = scmp.ne.s32.totalorder %s34, %s50
    %p52 = scmp.eq.s32.totalorder %s14, 0
    %p53 = por %p51, %p52
    %s54 = ssub.s32 %s15, %s27
    %s55 = ssub.s32 %s16, %s23
    %s56 = sor.u32 %s54, %s55
    %p57 = scmp.eq.s32.totalorder %s56, 0
    %s59 = sadd.s32 %s58, 1
    %s60 = scalar_select %p57, %s58, %s59
    %p63 = pneg %p57
    %p64 = scmp.eq.s32.totalorder %s8, 1
    %p65 = por %p63, %p64
    %p66 = scmp.ne.s32.totalorder %s58, %s61
    %p67 = scmp.eq.s32.totalorder %s8, 0
    %p68 = por %p66, %p67
    %p69 = scmp.ne.s32.totalorder %s58, %s61
    %p70 = scmp.eq.s32.totalorder %s13, 1
    %p71 = por %p69, %p70
    %p72 = scmp.ne.s32.totalorder %s61, %s62
    %p73 = scmp.eq.s32.totalorder %s13, 0
    %p74 = por %p72, %p73
    %p75 = scmp.ne.s32.totalorder %s61, %s62
    %p76 = scmp.eq.s32.totalorder %s14, 1
    %p77 = por %p75, %p76
    %p79 = scmp.ne.s32.totalorder %s62, %s78
    %p80 = scmp.eq.s32.totalorder %s14, 0
    %p81 = por %p79, %p80
    %s82 = ssub.s32 %s15, %s27
    %s83 = ssub.s32 %s16, %s23
    %s84 = sor.u32 %s82, %s83
    %p85 = scmp.eq.s32.totalorder %s84, 0
    %s87 = sadd.s32 %s86, 1
    %s88 = scalar_select %p85, %s86, %s87
    %p91 = pneg %p85
    %p92 = scmp.eq.s32.totalorder %s8, 1
    %p93 = por %p91, %p92
    %p94 = scmp.ne.s32.totalorder %s86, %s89
    %p95 = scmp.eq.s32.totalorder %s8, 0
    %p96 = por %p94, %p95
    %p97 = scmp.ne.s32.totalorder %s86, %s89
    %p98 = scmp.eq.s32.totalorder %s13, 1
    %p99 = por %p97, %p98
    %p100 = scmp.ne.s32.totalorder %s89, %s90
    %p101 = scmp.eq.s32.totalorder %s13, 0
    %p102 = por %p100, %p101
    %p103 = scmp.ne.s32.totalorder %s89, %s90
    %p104 = scmp.eq.s32.totalorder %s14, 1
    %p105 = por %p103, %p104
    %p107 = scmp.ne.s32.totalorder %s90, %s106
    %p108 = scmp.eq.s32.totalorder %s14, 0
    %p109 = por %p107, %p108
    %p110 = scmp.le.s32.totalorder 1, %s8
    %p111 = scmp.lt.s32.totalorder %s8, 3
    %p112 = pnand %p110, %p111
    %p113 = pneg %p112
    // Predicated region
    $region9: #{run.2} parent=5 // pred_check
      _
    $region10: #{run.2} parent=5 // pred_check_branch
      %115 = sbr.rel (%p112) target = $region12
    $region11: #{run.2} parent=5 // pred_region
      %s116 = ssub.s32 %s8, 1
    $region12: #{run.2} parent=5 // pred_fallthru
      _
    %p117 = scmp.lt.s32.totalorder %s8, 2
    // Predicated region
    $region13: #{run.2} parent=5 // pred_check
      %p118 = pneg %p117
    $region14: #{run.2} parent=5 // pred_check_branch
      %120 = sbr.rel (%p118) target = $region16
    $region15: #{run.2} parent=5 // pred_region
      // Predicated region
      $region17: #{run.2} parent=15 // pred_check
        %p121 = pneg %p40
      $region18: #{run.2} parent=15 // pred_check_branch
        %123 = sbr.rel (%p121) target = $region20
      $region19: #{run.2} parent=15 // pred_region
        %p124 = scmp.lt.s32.totalorder %s15, 1
        %s125 = scalar_select %p124, %s15, 1
        %s126 = smul.addr %s125, 12
        %s127 = smul.addr %s126, 4
        %s128 = scalar_lea.vmem %s0, %s127
      $region20: #{run.2} parent=15 // pred_fallthru
        _
      // Predicated region
      $region21: #{run.2} parent=15 // pred_check
        %p129 = pneg %p68
      $region22: #{run.2} parent=15 // pred_check_branch
        %131 = sbr.rel (%p129) target = $region24
      $region23: #{run.2} parent=15 // pred_region
        %s132 = smul.u32 2, %s16
        %p133 = scmp.lt.s32.totalorder %s15, 1
        %s134 = scalar_select %p133, %s15, 1
        %p135 = scmp.lt.s32.totalorder %s132, 1
        %s136 = scalar_select %p135, %s132, 1
        %s137 = smul.addr %s134, 12
        %s138 = sadd.s32 %s136, %s137
        %s139 = smul.addr %s138, 4
        %s140 = scalar_lea.vmem %s1, %s139
        %s141 = smul.u32 2, %s16
      $region24: #{run.2} parent=15 // pred_fallthru
        _
    $region16: #{run.2} parent=5 // pred_fallthru
      _
    %p142 = scmp.le.s32.totalorder 1, %s8
    %p143 = scmp.lt.s32.totalorder %s8, 3
    %p144 = pnand %p142, %p143
    %p145 = pneg %p144
    // Predicated region
    $region25: #{run.2} parent=5 // pred_check
      _
    $region26: #{run.2} parent=5 // pred_check_branch
      %147 = sbr.rel (%p144) target = $region28
    $region27: #{run.2} parent=5 // pred_region
      %s148 = ssub.s32 %s8, 1
      %p149 = scmp.lt.s32.totalorder %s17, 1
      %s150 = scalar_select %p149, %s17, 1
      %s151 = smul.addr %s150, 12
      %s152 = smul.addr %s151, 4
      %s153 = scalar_lea.vmem %s0, %s152
      %p154 = pneg %p46
      %p155 = pneg %p43
      %s156 = smul.u32 2, %s18
      %p157 = scmp.lt.s32.totalorder %s17, 1
      %s158 = scalar_select %p157, %s17, 1
      %p159 = scmp.lt.s32.totalorder %s156, 1
      %s160 = scalar_select %p159, %s156, 1
      %s161 = smul.addr %s158, 12
      %s162 = sadd.s32 %s160, %s161
      %s163 = smul.addr %s162, 4
      %s164 = scalar_lea.vmem %s1, %s163
      %p165 = pneg %p74
      %p166 = pneg %p71
      %p167 = pneg %p102
      %p168 = pneg %p99
      %s169 = smul.u32 2, %s18
      %p170 = scmp.lt.s32.totalorder %s17, 1
      %s171 = scalar_select %p170, %s17, 1
      %p172 = scmp.lt.s32.totalorder %s169, 1
      %s173 = scalar_select %p172, %s169, 1
      %s174 = smul.addr %s171, 2
      %s175 = sadd.s32 %s173, %s174
      %s176 = scalar_lea.vmem %s2, %s175
      %p177 = scmp.lt.s32.totalorder %s17, 1
      %s178 = scalar_select %p177, %s17, 1
      %s179 = smul.addr %s178, 12
      %s180 = smul.addr %s179, 4
      %s181 = scalar_lea.vmem %s0, %s180
      %s182 = smul.u32 2, %s18
      %p183 = scmp.lt.s32.totalorder %s17, 1
      %s184 = scalar_select %p183, %s17, 1
      %p185 = scmp.lt.s32.totalorder %s182, 1
      %s186 = scalar_select %p185, %s182, 1
      %s187 = smul.addr %s184, 12
      %s188 = sadd.s32 %s186, %s187
      %s189 = smul.addr %s188, 4
      %s190 = scalar_lea.vmem %s1, %s189
      %s191 = smul.u32 2, %s18
      %s192 = smul.u32 2, %s18
      %p193 = scmp.lt.s32.totalorder %s17, 1
      %s194 = scalar_select %p193, %s17, 1
      %p195 = scmp.lt.s32.totalorder %s192, 1
      %s196 = scalar_select %p195, %s192, 1
      %s197 = smul.addr %s194, 2
      %s198 = sadd.s32 %s196, %s197
      %s199 = scalar_lea.vmem %s2, %s198
      %s200 = smul.u32 2, %s18
      %v202 = vld [vmem:[%s181] sm:$0xff]
      %v203 = vld [vmem:[%s181 + $0x8] sm:$0xff]
      %v204 = vld [vmem:[%s181 + $0x10] sm:$0xff]
      %v205 = vld [vmem:[%s181 + $0x18] sm:$0xff]
      %v206 = vld [vmem:[%s181 + $0x20] sm:$0xff]
      %v207 = vld [vmem:[%s181 + $0x28] sm:$0xff]
      %v208 = vld [vmem:[%s190] sm:$0xff]
      %v209 = vld [vmem:[%s190 + $0x8] sm:$0xff]
      %v210 = vld [vmem:[%s190 + $0x10] sm:$0xff]
      %v211 = vld [vmem:[%s190 + $0x18] sm:$0xff]
      %v212 = vld [vmem:[%s190 + $0x20] sm:$0xff]
      %v213 = vld [vmem:[%s190 + $0x28] sm:$0xff]
      %v220 = vunpack.c.l.b16 %v202
      %v221 = vunpack.c.h.b16 %v202
      %v222 = vunpack.c.l.b16 %v203
      %v223 = vunpack.c.h.b16 %v203
      %v224 = vunpack.c.l.b16 %v204
      %v225 = vunpack.c.h.b16 %v204
      %v226 = vunpack.c.l.b16 %v205
      %v227 = vunpack.c.h.b16 %v205
      %v228 = vunpack.c.l.b16 %v206
      %v229 = vunpack.c.h.b16 %v206
      %v230 = vunpack.c.l.b16 %v207
      %v231 = vunpack.c.h.b16 %v207
      %v232 = vpack.c.b16 %v222, %v220
      %v233 = vpack.c.b16 %v223, %v221
      %v234 = vpack.c.b16 %v226, %v224
      %v235 = vpack.c.b16 %v227, %v225
      %v236 = vpack.c.b16 %v230, %v228
      %v237 = vpack.c.b16 %v231, %v229
      %244 = vxpose.xlu0.c.b16.start [1/8] %v232, 128
      %245 = vxpose.xlu0.c.b16.cont [2/8] %v234, 128
      %246 = vxpose.xlu0.c.b16.cont [3/8] %v236, 128
      %247 = vxpose.xlu0.c.b16.cont [4/8] 0, 128
      %248 = vxpose.xlu0.c.b16.cont [5/8] 0, 128
      %249 = vxpose.xlu0.c.b16.cont [6/8] 0, 128
      %250 = vxpose.xlu0.c.b16.cont [7/8] 0, 128
      %251 = vxpose.xlu0.c.b16.end [8/8] 0, 128
      %v252 = vpop.trf.xlu0
      %v253 = vpop.trf.xlu0
      %v254 = vpop.trf.xlu0
      %v255 = vpop.trf.xlu0
      %v256 = vpop.trf.xlu0
      %v257 = vpop.trf.xlu0
      %v258 = vpop.trf.xlu0
      %v259 = vpop.trf.xlu0
      %260 = vxpose.xlu0.c.b16.start [1/8] %v233, 128
      %261 = vxpose.xlu0.c.b16.cont [2/8] %v235, 128
      %262 = vxpose.xlu0.c.b16.cont [3/8] %v237, 128
      %263 = vxpose.xlu0.c.b16.cont [4/8] 0, 128
      %264 = vxpose.xlu0.c.b16.cont [5/8] 0, 128
      %265 = vxpose.xlu0.c.b16.cont [6/8] 0, 128
      %266 = vxpose.xlu0.c.b16.cont [7/8] 0, 128
      %267 = vxpose.xlu0.c.b16.end [8/8] 0, 128
      %v268 = vpop.trf.xlu0
      %v269 = vpop.trf.xlu0
      %v270 = vpop.trf.xlu0
      %v271 = vpop.trf.xlu0
      %v272 = vpop.trf.xlu0
      %v273 = vpop.trf.xlu0
      %v274 = vpop.trf.xlu0
      %v275 = vpop.trf.xlu0
      %v282 = vunpack.c.l.b16 %v208
      %v283 = vunpack.c.h.b16 %v208
      %v284 = vunpack.c.l.b16 %v209
      %v285 = vunpack.c.h.b16 %v209
      %v286 = vunpack.c.l.b16 %v210
      %v287 = vunpack.c.h.b16 %v210
      %v288 = vunpack.c.l.b16 %v211
      %v289 = vunpack.c.h.b16 %v211
      %v290 = vunpack.c.l.b16 %v212
      %v291 = vunpack.c.h.b16 %v212
      %v292 = vunpack.c.l.b16 %v213
      %v293 = vunpack.c.h.b16 %v213
      %v294 = vpack.c.b16 %v284, %v282
      %v295 = vpack.c.b16 %v285, %v283
      %v296 = vpack.c.b16 %v288, %v286
      %v297 = vpack.c.b16 %v289, %v287
      %v298 = vpack.c.b16 %v292, %v290
      %v299 = vpack.c.b16 %v293, %v291
      %vm306 = vcmask 392192
      %v308 = vsel %vm306, %v252, 0
      %v311 = vsel %vm306, %v253, 0
      %v314 = vsel %vm306, %v254, 0
      %v317 = vsel %vm306, %v255, 0
      %v320 = vsel %vm306, %v256, 0
      %v323 = vsel %vm306, %v257, 0
      %v326 = vsel %vm306, %v258, 0
      %v329 = vsel %vm306, %v259, 0
      %v332 = vsel %vm306, %v268, 0
      %v335 = vsel %vm306, %v269, 0
      %v338 = vsel %vm306, %v270, 0
      %v341 = vsel %vm306, %v271, 0
      %v344 = vsel %vm306, %v272, 0
      %v347 = vsel %vm306, %v273, 0
      %v350 = vsel %vm306, %v274, 0
      %v353 = vsel %vm306, %v275, 0
      %355 = vmatprep.subr.bf16.mxu0 %v295
      %356 = vmatpush1.bf16.msra.mxu0 %v294
      %357 = vmatprep.subr.bf16.mxu0 %v297
      %358 = vmatpush1.bf16.msra.mxu0 %v296
      %359 = vmatprep.subr.bf16.mxu0 %v299
      %360 = vmatpush1.bf16.msra.mxu0 %v298
      %361 = vmatprep.subr.bf16.mxu0 0
      %362 = vmatpush1.bf16.msra.mxu0 0
      %363 = vmatprep.subr.bf16.mxu0 0
      %364 = vmatpush1.bf16.msra.mxu0 0
      %365 = vmatprep.subr.bf16.mxu0 0
      %366 = vmatpush1.bf16.msra.mxu0 0
      %367 = vmatprep.subr.bf16.mxu0 0
      %368 = vmatpush1.bf16.msra.mxu0 0
      %369 = vmatprep.subr.bf16.mxu0 0
      %370 = vmatpush1.bf16.msra.mxu0 0
      %371 = vmatprep.subr.bf16.mxu0 0
      %372 = vmatpush1.bf16.msra.mxu0 0
      %373 = vmatprep.subr.bf16.mxu0 0
      %374 = vmatpush1.bf16.msra.mxu0 0
      %375 = vmatprep.subr.bf16.mxu0 0
      %376 = vmatpush1.bf16.msra.mxu0 0
      %377 = vmatprep.subr.bf16.mxu0 0
      %378 = vmatpush1.bf16.msra.mxu0 0
      %379 = vmatprep.subr.bf16.mxu0 0
      %380 = vmatpush1.bf16.msra.mxu0 0
      %381 = vmatprep.subr.bf16.mxu0 0
      %382 = vmatpush1.bf16.msra.mxu0 0
      %383 = vmatprep.subr.bf16.mxu0 0
      %384 = vmatpush1.bf16.msra.mxu0 0
      %385 = vmatprep.subr.bf16.mxu0 0
      %386 = vmatpush1.bf16.msra.mxu0 0
      %387 = vmatprep.mubr.bf16.mxu0 0
      %388 = vmatmul.mubr.bf16.gmra.mrb[0].mxu0 %v308
      %v389 = vpop.f32.mrb[0].mxu0
      %v390 = vadd.f32 0.0, %v389
      %v391 = vpop.f32.mrb[0].mxu0
      %v392 = vadd.f32 0.0, %v391
      %v393 = vpop.f32.mrb[0].mxu0
      %v394 = vadd.f32 0.0, %v393
      %v395 = vpop.f32.mrb[0].mxu0
      %v396 = vadd.f32 0.0, %v395
      %397 = vmatprep.mubr.bf16.mxu0 0
      %398 = vmatmul.mubr.bf16.gmra.mrb[0].mxu0 %v311
      %v399 = vpop.f32.mrb[0].mxu0
      %v400 = vadd.f32 0.0, %v399
      %v401 = vpop.f32.mrb[0].mxu0
      %v402 = vadd.f32 0.0, %v401
      %v403 = vpop.f32.mrb[0].mxu0
      %v404 = vadd.f32 0.0, %v403
      %v405 = vpop.f32.mrb[0].mxu0
      %v406 = vadd.f32 0.0, %v405
      %407 = vmatprep.mubr.bf16.mxu0 0
      %408 = vmatmul.mubr.bf16.gmra.mrb[0].mxu0 %v314
      %v409 = vpop.f32.mrb[0].mxu0
      %v410 = vadd.f32 0.0, %v409
      %v411 = vpop.f32.mrb[0].mxu0
      %v412 = vadd.f32 0.0, %v411
      %v413 = vpop.f32.mrb[0].mxu0
      %v414 = vadd.f32 0.0, %v413
      %v415 = vpop.f32.mrb[0].mxu0
      %v416 = vadd.f32 0.0, %v415
      %417 = vmatprep.mubr.bf16.mxu0 0
      %418 = vmatmul.mubr.bf16.gmra.mrb[0].mxu0 %v317
      %v419 = vpop.f32.mrb[0].mxu0
      %v420 = vadd.f32 0.0, %v419
      %v421 = vpop.f32.mrb[0].mxu0
      %v422 = vadd.f32 0.0, %v421
      %v423 = vpop.f32.mrb[0].mxu0
      %v424 = vadd.f32 0.0, %v423
      %v425 = vpop.f32.mrb[0].mxu0
      %v426 = vadd.f32 0.0, %v425
      %427 = vmatprep.mubr.bf16.mxu0 0
      %428 = vmatmul.mubr.bf16.gmra.mrb[0].mxu0 %v320
      %v429 = vpop.f32.mrb[0].mxu0
      %v430 = vadd.f32 0.0, %v429
      %v431 = vpop.f32.mrb[0].mxu0
      %v432 = vadd.f32 0.0, %v431
      %v433 = vpop.f32.mrb[0].mxu0
      %v434 = vadd.f32 0.0, %v433
      %v435 = vpop.f32.mrb[0].mxu0
      %v436 = vadd.f32 0.0, %v435
      %437 = vmatprep.mubr.bf16.mxu0 0
      %438 = vmatmul.mubr.bf16.gmra.mrb[0].mxu0 %v323
      %v439 = vpop.f32.mrb[0].mxu0
      %v440 = vadd.f32 0.0, %v439
      %v441 = vpop.f32.mrb[0].mxu0
      %v442 = vadd.f32 0.0, %v441
      %v443 = vpop.f32.mrb[0].mxu0
      %v444 = vadd.f32 0.0, %v443
      %v445 = vpop.f32.mrb[0].mxu0
      %v446 = vadd.f32 0.0, %v445
      %447 = vmatprep.mubr.bf16.mxu0 0
      %448 = vmatmul.mubr.bf16.gmra.mrb[0].mxu0 %v326
      %v449 = vpop.f32.mrb[0].mxu0
      %v450 = vadd.f32 0.0, %v449
      %v451 = vpop.f32.mrb[0].mxu0
      %v452 = vadd.f32 0.0, %v451
      %v453 = vpop.f32.mrb[0].mxu0
      %v454 = vadd.f32 0.0, %v453
      %v455 = vpop.f32.mrb[0].mxu0
      %v456 = vadd.f32 0.0, %v455
      %457 = vmatprep.mubr.bf16.mxu0 0
      %458 = vmatmul.mubr.bf16.gmra.mrb[0].mxu0 %v329
      %v459 = vpop.f32.mrb[0].mxu0
      %v460 = vadd.f32 0.0, %v459
      %v461 = vpop.f32.mrb[0].mxu0
      %v462 = vadd.f32 0.0, %v461
      %v463 = vpop.f32.mrb[0].mxu0
      %v464 = vadd.f32 0.0, %v463
      %v465 = vpop.f32.mrb[0].mxu0
      %v466 = vadd.f32 0.0, %v465
      %467 = vmatprep.mubr.bf16.mxu0 0
      %468 = vmatmul.mubr.bf16.gmra.mrb[0].mxu0 %v332
      %v469 = vpop.f32.mrb[0].mxu0
      %v470 = vadd.f32 0.0, %v469
      %v471 = vpop.f32.mrb[0].mxu0
      %v472 = vadd.f32 0.0, %v471
      %v473 = vpop.f32.mrb[0].mxu0
      %v474 = vadd.f32 0.0, %v473
      %v475 = vpop.f32.mrb[0].mxu0
      %v476 = vadd.f32 0.0, %v475
      %477 = vmatprep.mubr.bf16.mxu0 0
      %478 = vmatmul.mubr.bf16.gmra.mrb[0].mxu0 %v335
      %v479 = vpop.f32.mrb[0].mxu0
      %v480 = vadd.f32 0.0, %v479
      %v481 = vpop.f32.mrb[0].mxu0
      %v482 = vadd.f32 0.0, %v481
      %v483 = vpop.f32.mrb[0].mxu0
      %v484 = vadd.f32 0.0, %v483
      %v485 = vpop.f32.mrb[0].mxu0
      %v486 = vadd.f32 0.0, %v485
      %487 = vmatprep.mubr.bf16.mxu0 0
      %488 = vmatmul.mubr.bf16.gmra.mrb[0].mxu0 %v338
      %v489 = vpop.f32.mrb[0].mxu0
      %v490 = vadd.f32 0.0, %v489
      %v491 = vpop.f32.mrb[0].mxu0
      %v492 = vadd.f32 0.0, %v491
      %v493 = vpop.f32.mrb[0].mxu0
      %v494 = vadd.f32 0.0, %v493
      %v495 = vpop.f32.mrb[0].mxu0
      %v496 = vadd.f32 0.0, %v495
      %497 = vmatprep.mubr.bf16.mxu0 0
      %498 = vmatmul.mubr.bf16.gmra.mrb[0].mxu0 %v341
      %v499 = vpop.f32.mrb[0].mxu0
      %v500 = vadd.f32 0.0, %v499
      %v501 = vpop.f32.mrb[0].mxu0
      %v502 = vadd.f32 0.0, %v501
      %v503 = vpop.f32.mrb[0].mxu0
      %v504 = vadd.f32 0.0, %v503
      %v505 = vpop.f32.mrb[0].mxu0
      %v506 = vadd.f32 0.0, %v505
      %507 = vmatprep.mubr.bf16.mxu0 0
      %508 = vmatmul.mubr.bf16.gmra.mrb[0].mxu0 %v344
      %v509 = vpop.f32.mrb[0].mxu0
      %v510 = vadd.f32 0.0, %v509
      %v511 = vpop.f32.mrb[0].mxu0
      %v512 = vadd.f32 0.0, %v511
      %v513 = vpop.f32.mrb[0].mxu0
      %v514 = vadd.f32 0.0, %v513
      %v515 = vpop.f32.mrb[0].mxu0
      %v516 = vadd.f32 0.0, %v515
      %517 = vmatprep.mubr.bf16.mxu0 0
      %518 = vmatmul.mubr.bf16.gmra.mrb[0].mxu0 %v347
      %v519 = vpop.f32.mrb[0].mxu0
      %v520 = vadd.f32 0.0, %v519
      %v521 = vpop.f32.mrb[0].mxu0
      %v522 = vadd.f32 0.0, %v521
      %v523 = vpop.f32.mrb[0].mxu0
      %v524 = vadd.f32 0.0, %v523
      %v525 = vpop.f32.mrb[0].mxu0
      %v526 = vadd.f32 0.0, %v525
      %527 = vmatprep.mubr.bf16.mxu0 0
      %528 = vmatmul.mubr.bf16.gmra.mrb[0].mxu0 %v350
      %v529 = vpop.f32.mrb[0].mxu0
      %v530 = vadd.f32 0.0, %v529
      %v531 = vpop.f32.mrb[0].mxu0
      %v532 = vadd.f32 0.0, %v531
      %v533 = vpop.f32.mrb[0].mxu0
      %v534 = vadd.f32 0.0, %v533
      %v535 = vpop.f32.mrb[0].mxu0
      %v536 = vadd.f32 0.0, %v535
      %537 = vmatprep.mubr.bf16.mxu0 0
      %538 = vmatmul.mubr.bf16.gmra.mrb[0].mxu0 %v353
      %v539 = vpop.f32.mrb[0].mxu0
      %v540 = vadd.f32 0.0, %v539
      %v541 = vpop.f32.mrb[0].mxu0
      %v542 = vadd.f32 0.0, %v541
      %v543 = vpop.f32.mrb[0].mxu0
      %v544 = vadd.f32 0.0, %v543
      %v545 = vpop.f32.mrb[0].mxu0
      %v546 = vadd.f32 0.0, %v545
      %547 = vdwg.mxu0
      %v548 = vlaneseq
      %v549 = vshrl.u32 %v548, 7
      %v550 = vadd.s32 %v549, 8
      %v551 = vadd.s32 %v549, 16
      %v552 = vadd.s32 %v549, 24
      %v553 = vadd.s32 %v549, 32
      %v554 = vadd.s32 %v549, 40
      %v555 = vadd.s32 %v549, 48
      %v556 = vadd.s32 %v549, 56
      %v557 = vadd.s32 %v549, 64
      %v558 = vadd.s32 %v549, 72
      %v559 = vadd.s32 %v549, 80
      %v560 = vadd.s32 %v549, 88
      %v561 = vadd.s32 %v549, 96
      %v562 = vadd.s32 %v549, 104
      %v563 = vadd.s32 %v549, 112
      %v564 = vadd.s32 %v549, 120
      %v565 = vadd.s32 %v549, 128
      %v566 = vadd.s32 %v549, 136
      %v567 = vadd.s32 %v549, 144
      %v568 = vadd.s32 %v549, 152
      %v569 = vadd.s32 %v549, 160
      %v570 = vadd.s32 %v549, 168
      %v571 = vadd.s32 %v549, 176
      %v572 = vadd.s32 %v549, 184
      %v573 = vadd.s32 %v549, 192
      %v574 = vadd.s32 %v549, 200
      %v575 = vadd.s32 %v549, 208
      %v576 = vadd.s32 %v549, 216
      %v577 = vadd.s32 %v549, 224
      %v578 = vadd.s32 %v549, 232
      %v579 = vadd.s32 %v549, 240
      %v580 = vadd.s32 %v549, 248
      %v581 = vmax.f32 %v390, %v400
      %v582 = vmax.f32 %v394, %v404
      %v583 = vmax.f32 %v581, %v410
      %v584 = vmax.f32 %v582, %v414
      %v585 = vmax.f32 %v583, %v420
      %v586 = vmax.f32 %v584, %v424
      %v587 = vmax.f32 %v585, %v430
      %v588 = vmax.f32 %v586, %v434
      %v589 = vmax.f32 %v587, %v440
      %v590 = vmax.f32 %v588, %v444
      %v591 = vmax.f32 %v589, %v450
      %v592 = vmax.f32 %v590, %v454
      %v593 = vmax.f32 %v591, %v460
      %v594 = vmax.f32 %v592, %v464
      %v595 = vmax.f32 %v593, %v470
      %v596 = vmax.f32 %v594, %v474
      %v597 = vmax.f32 %v595, %v480
      %v598 = vmax.f32 %v596, %v484
      %v599 = vmax.f32 %v597, %v490
      %v600 = vmax.f32 %v598, %v494
      %v601 = vmax.f32 %v599, %v500
      %v602 = vmax.f32 %v600, %v504
      %v603 = vmax.f32 %v601, %v510
      %v604 = vmax.f32 %v602, %v514
      %v605 = vmax.f32 %v603, %v520
      %v606 = vmax.f32 %v604, %v524
      %v607 = vmax.f32 %v605, %v530
      %v608 = vmax.f32 %v606, %v534
      %v609 = vmax.f32 %v607, %v540
      %v610 = vmax.f32 %v608, %v544
      %v611 = vmax.f32 %v609, %v610
      %v612 = vrot.slane %v611, 4
      %v613 = vmax.f32 %v611, %v612
      %v614 = vrot.slane %v613, 2
      %v615 = vmax.f32 %v613, %v614
      %v616 = vrot.slane %v615, 1
      %v617 = vmax.f32 %v615, %v616
      %v618 = vmax.f32 %v392, %v402
      %v619 = vmax.f32 %v396, %v406
      %v620 = vmax.f32 %v618, %v412
      %v621 = vmax.f32 %v619, %v416
      %v622 = vmax.f32 %v620, %v422
      %v623 = vmax.f32 %v621, %v426
      %v624 = vmax.f32 %v622, %v432
      %v625 = vmax.f32 %v623, %v436
      %v626 = vmax.f32 %v624, %v442
      %v627 = vmax.f32 %v625, %v446
      %v628 = vmax.f32 %v626, %v452
      %v629 = vmax.f32 %v627, %v456
      %v630 = vmax.f32 %v628, %v462
      %v631 = vmax.f32 %v629, %v466
      %v632 = vmax.f32 %v630, %v472
      %v633 = vmax.f32 %v631, %v476
      %v634 = vmax.f32 %v632, %v482
      %v635 = vmax.f32 %v633, %v486
      %v636 = vmax.f32 %v634, %v492
      %v637 = vmax.f32 %v635, %v496
      %v638 = vmax.f32 %v636, %v502
      %v639 = vmax.f32 %v637, %v506
      %v640 = vmax.f32 %v638, %v512
      %v641 = vmax.f32 %v639, %v516
      %v642 = vmax.f32 %v640, %v522
      %v643 = vmax.f32 %v641, %v526
      %v644 = vmax.f32 %v642, %v532
      %v645 = vmax.f32 %v643, %v536
      %v646 = vmax.f32 %v644, %v542
      %v647 = vmax.f32 %v645, %v546
      %v648 = vmax.f32 %v646, %v647
      %v649 = vrot.slane %v648, 4
      %v650 = vmax.f32 %v648, %v649
      %v651 = vrot.slane %v650, 2
      %v652 = vmax.f32 %v650, %v651
      %v653 = vrot.slane %v652, 1
      %v654 = vmax.f32 %v652, %v653
      %vm655 = vcmp.eq.f32.partialorder %v390, %v617
      %vm656 = vcmp.eq.f32.partialorder %v392, %v654
      %vm657 = vcmp.eq.f32.partialorder %v394, %v617
      %vm658 = vcmp.eq.f32.partialorder %v396, %v654
      %vm659 = vcmp.eq.f32.partialorder %v400, %v617
      %vm660 = vcmp.eq.f32.partialorder %v402, %v654
      %vm661 = vcmp.eq.f32.partialorder %v404, %v617
      %vm662 = vcmp.eq.f32.partialorder %v406, %v654
      %vm663 = vcmp.eq.f32.partialorder %v410, %v617
      %vm664 = vcmp.eq.f32.partialorder %v412, %v654
      %vm665 = vcmp.eq.f32.partialorder %v414, %v617
      %vm666 = vcmp.eq.f32.partialorder %v416, %v654
      %vm667 = vcmp.eq.f32.partialorder %v420, %v617
      %vm668 = vcmp.eq.f32.partialorder %v422, %v654
      %vm669 = vcmp.eq.f32.partialorder %v424, %v617
      %vm670 = vcmp.eq.f32.partialorder %v426, %v654
      %vm671 = vcmp.eq.f32.partialorder %v430, %v617
      %vm672 = vcmp.eq.f32.partialorder %v432, %v654
      %vm673 = vcmp.eq.f32.partialorder %v434, %v617
      %vm674 = vcmp.eq.f32.partialorder %v436, %v654
      %vm675 = vcmp.eq.f32.partialorder %v440, %v617
      %vm676 = vcmp.eq.f32.partialorder %v442, %v654
      %vm677 = vcmp.eq.f32.partialorder %v444, %v617
      %vm678 = vcmp.eq.f32.partialorder %v446, %v654
      %vm679 = vcmp.eq.f32.partialorder %v450, %v617
      %vm680 = vcmp.eq.f32.partialorder %v452, %v654
      %vm681 = vcmp.eq.f32.partialorder %v454, %v617
      %vm682 = vcmp.eq.f32.partialorder %v456, %v654
      %vm683 = vcmp.eq.f32.partialorder %v460, %v617
      %vm684 = vcmp.eq.f32.partialorder %v462, %v654
      %vm685 = vcmp.eq.f32.partialorder %v464, %v617
      %vm686 = vcmp.eq.f32.partialorder %v466, %v654
      %vm687 = vcmp.eq.f32.partialorder %v470, %v617
      %vm688 = vcmp.eq.f32.partialorder %v472, %v654
      %vm689 = vcmp.eq.f32.partialorder %v474, %v617
      %vm690 = vcmp.eq.f32.partialorder %v476, %v654
      %vm691 = vcmp.eq.f32.partialorder %v480, %v617
      %vm692 = vcmp.eq.f32.partialorder %v482, %v654
      %vm693 = vcmp.eq.f32.partialorder %v484, %v617
      %vm694 = vcmp.eq.f32.partialorder %v486, %v654
      %vm695 = vcmp.eq.f32.partialorder %v490, %v617
      %vm696 = vcmp.eq.f32.partialorder %v492, %v654
      %vm697 = vcmp.eq.f32.partialorder %v494, %v617
      %vm698 = vcmp.eq.f32.partialorder %v496, %v654
      %vm699 = vcmp.eq.f32.partialorder %v500, %v617
      %vm700 = vcmp.eq.f32.partialorder %v502, %v654
      %vm701 = vcmp.eq.f32.partialorder %v504, %v617
      %vm702 = vcmp.eq.f32.partialorder %v506, %v654
      %vm703 = vcmp.eq.f32.partialorder %v510, %v617
      %vm704 = vcmp.eq.f32.partialorder %v512, %v654
      %vm705 = vcmp.eq.f32.partialorder %v514, %v617
      %vm706 = vcmp.eq.f32.partialorder %v516, %v654
      %vm707 = vcmp.eq.f32.partialorder %v520, %v617
      %vm708 = vcmp.eq.f32.partialorder %v522, %v654
      %vm709 = vcmp.eq.f32.partialorder %v524, %v617
      %vm710 = vcmp.eq.f32.partialorder %v526, %v654
      %vm711 = vcmp.eq.f32.partialorder %v530, %v617
      %vm712 = vcmp.eq.f32.partialorder %v532, %v654
      %vm713 = vcmp.eq.f32.partialorder %v534, %v617
      %vm714 = vcmp.eq.f32.partialorder %v536, %v654
      %vm715 = vcmp.eq.f32.partialorder %v540, %v617
      %vm716 = vcmp.eq.f32.partialorder %v542, %v654
      %vm717 = vcmp.eq.f32.partialorder %v544, %v617
      %vm718 = vcmp.eq.f32.partialorder %v546, %v654
      %v719 = vsel %vm655, %v549, 256
      %v720 = vsel %vm656, %v549, 256
      %v721 = vsel %vm657, %v550, 256
      %v722 = vsel %vm658, %v550, 256
      %v723 = vsel %vm659, %v551, 256
      %v724 = vsel %vm660, %v551, 256
      %v725 = vsel %vm661, %v552, 256
      %v726 = vsel %vm662, %v552, 256
      %v727 = vsel %vm663, %v553, 256
      %v728 = vsel %vm664, %v553, 256
      %v729 = vsel %vm665, %v554, 256
      %v730 = vsel %vm666, %v554, 256
      %v731 = vsel %vm667, %v555, 256
      %v732 = vsel %vm668, %v555, 256
      %v733 = vsel %vm669, %v556, 256
      %v734 = vsel %vm670, %v556, 256
      %v735 = vsel %vm671, %v557, 256
      %v736 = vsel %vm672, %v557, 256
      %v737 = vsel %vm673, %v558, 256
      %v738 = vsel %vm674, %v558, 256
      %v739 = vsel %vm675, %v559, 256
      %v740 = vsel %vm676, %v559, 256
      %v741 = vsel %vm677, %v560, 256
      %v742 = vsel %vm678, %v560, 256
      %v743 = vsel %vm679, %v561, 256
      %v744 = vsel %vm680, %v561, 256
      %v745 = vsel %vm681, %v562, 256
      %v746 = vsel %vm682, %v562, 256
      %v747 = vsel %vm683, %v563, 256
      %v748 = vsel %vm684, %v563, 256
      %v749 = vsel %vm685, %v564, 256
      %v750 = vsel %vm686, %v564, 256
      %v751 = vsel %vm687, %v565, 256
      %v752 = vsel %vm688, %v565, 256
      %v753 = vsel %vm689, %v566, 256
      %v754 = vsel %vm690, %v566, 256
      %v755 = vsel %vm691, %v567, 256
      %v756 = vsel %vm692, %v567, 256
      %v757 = vsel %vm693, %v568, 256
      %v758 = vsel %vm694, %v568, 256
      %v759 = vsel %vm695, %v569, 256
      %v760 = vsel %vm696, %v569, 256
      %v761 = vsel %vm697, %v570, 256
      %v762 = vsel %vm698, %v570, 256
      %v763 = vsel %vm699, %v571, 256
      %v764 = vsel %vm700, %v571, 256
      %v765 = vsel %vm701, %v572, 256
      %v766 = vsel %vm702, %v572, 256
      %v767 = vsel %vm703, %v573, 256
      %v768 = vsel %vm704, %v573, 256
      %v769 = vsel %vm705, %v574, 256
      %v770 = vsel %vm706, %v574, 256
      %v771 = vsel %vm707, %v575, 256
      %v772 = vsel %vm708, %v575, 256
      %v773 = vsel %vm709, %v576, 256
      %v774 = vsel %vm710, %v576, 256
      %v775 = vsel %vm711, %v577, 256
      %v776 = vsel %vm712, %v577, 256
      %v777 = vsel %vm713, %v578, 256
      %v778 = vsel %vm714, %v578, 256
      %v779 = vsel %vm715, %v579, 256
      %v780 = vsel %vm716, %v579, 256
      %v781 = vsel %vm717, %v580, 256
      %v782 = vsel %vm718, %v580, 256
      %vm783 = vcmp.lt.s32.totalorder %v719, %v723
      %v784 = vsel %vm783, %v719, %v723
      %vm785 = vcmp.lt.s32.totalorder %v721, %v725
      %v786 = vsel %vm785, %v721, %v725
      %vm787 = vcmp.lt.s32.totalorder %v784, %v727
      %v788 = vsel %vm787, %v784, %v727
      %vm789 = vcmp.lt.s32.totalorder %v786, %v729
      %v790 = vsel %vm789, %v786, %v729
      %vm791 = vcmp.lt.s32.totalorder %v788, %v731
      %v792 = vsel %vm791, %v788, %v731
      %vm793 = vcmp.lt.s32.totalorder %v790, %v733
      %v794 = vsel %vm793, %v790, %v733
      %vm795 = vcmp.lt.s32.totalorder %v792, %v735
      %v796 = vsel %vm795, %v792, %v735
      %vm797 = vcmp.lt.s32.totalorder %v794, %v737
      %v798 = vsel %vm797, %v794, %v737
      %vm799 = vcmp.lt.s32.totalorder %v796, %v739
      %v800 = vsel %vm799, %v796, %v739
      %vm801 = vcmp.lt.s32.totalorder %v798, %v741
      %v802 = vsel %vm801, %v798, %v741
      %vm803 = vcmp.lt.s32.totalorder %v800, %v743
      %v804 = vsel %vm803, %v800, %v743
      %vm805 = vcmp.lt.s32.totalorder %v802, %v745
      %v806 = vsel %vm805, %v802, %v745
      %vm807 = vcmp.lt.s32.totalorder %v804, %v747
      %v808 = vsel %vm807, %v804, %v747
      %vm809 = vcmp.lt.s32.totalorder %v806, %v749
      %v810 = vsel %vm809, %v806, %v749
      %vm811 = vcmp.lt.s32.totalorder %v808, %v751
      %v812 = vsel %vm811, %v808, %v751
      %vm813 = vcmp.lt.s32.totalorder %v810, %v753
      %v814 = vsel %vm813, %v810, %v753
      %vm815 = vcmp.lt.s32.totalorder %v812, %v755
      %v816 = vsel %vm815, %v812, %v755
      %vm817 = vcmp.lt.s32.totalorder %v814, %v757
      %v818 = vsel %vm817, %v814, %v757
      %vm819 = vcmp.lt.s32.totalorder %v816, %v759
      %v820 = vsel %vm819, %v816, %v759
      %vm821 = vcmp.lt.s32.totalorder %v818, %v761
      %v822 = vsel %vm821, %v818, %v761
      %vm823 = vcmp.lt.s32.totalorder %v820, %v763
      %v824 = vsel %vm823, %v820, %v763
      %vm825 = vcmp.lt.s32.totalorder %v822, %v765
      %v826 = vsel %vm825, %v822, %v765
      %vm827 = vcmp.lt.s32.totalorder %v824, %v767
      %v828 = vsel %vm827, %v824, %v767
      %vm829 = vcmp.lt.s32.totalorder %v826, %v769
      %v830 = vsel %vm829, %v826, %v769
      %vm831 = vcmp.lt.s32.totalorder %v828, %v771
      %v832 = vsel %vm831, %v828, %v771
      %vm833 = vcmp.lt.s32.totalorder %v830, %v773
      %v834 = vsel %vm833, %v830, %v773
      %vm835 = vcmp.lt.s32.totalorder %v832, %v775
      %v836 = vsel %vm835, %v832, %v775
      %vm837 = vcmp.lt.s32.totalorder %v834, %v777
      %v838 = vsel %vm837, %v834, %v777
      %vm839 = vcmp.lt.s32.totalorder %v836, %v779
      %v840 = vsel %vm839, %v836, %v779
      %vm841 = vcmp.lt.s32.totalorder %v838, %v781
      %v842 = vsel %vm841, %v838, %v781
      %vm843 = vcmp.lt.s32.totalorder %v840, %v842
      %v844 = vsel %vm843, %v840, %v842
      %v845 = vrot.slane %v844, 4
      %vm846 = vcmp.lt.s32.totalorder %v844, %v845
      %v847 = vsel %vm846, %v844, %v845
      %v848 = vrot.slane %v847, 2
      %vm849 = vcmp.lt.s32.totalorder %v847, %v848
      %v850 = vsel %vm849, %v847, %v848
      %v851 = vrot.slane %v850, 1
      %vm852 = vcmp.lt.s32.totalorder %v850, %v851
      %v853 = vsel %vm852, %v850, %v851
      %vm854 = vcmp.lt.s32.totalorder %v720, %v724
      %v855 = vsel %vm854, %v720, %v724
      %vm856 = vcmp.lt.s32.totalorder %v722, %v726
      %v857 = vsel %vm856, %v722, %v726
      %vm858 = vcmp.lt.s32.totalorder %v855, %v728
      %v859 = vsel %vm858, %v855, %v728
      %vm860 = vcmp.lt.s32.totalorder %v857, %v730
      %v861 = vsel %vm860, %v857, %v730
      %vm862 = vcmp.lt.s32.totalorder %v859, %v732
      %v863 = vsel %vm862, %v859, %v732
      %vm864 = vcmp.lt.s32.totalorder %v861, %v734
      %v865 = vsel %vm864, %v861, %v734
      %vm866 = vcmp.lt.s32.totalorder %v863, %v736
      %v867 = vsel %vm866, %v863, %v736
      %vm868 = vcmp.lt.s32.totalorder %v865, %v738
      %v869 = vsel %vm868, %v865, %v738
      %vm870 = vcmp.lt.s32.totalorder %v867, %v740
      %v871 = vsel %vm870, %v867, %v740
      %vm872 = vcmp.lt.s32.totalorder %v869, %v742
      %v873 = vsel %vm872, %v869, %v742
      %vm874 = vcmp.lt.s32.totalorder %v871, %v744
      %v875 = vsel %vm874, %v871, %v744
      %vm876 = vcmp.lt.s32.totalorder %v873, %v746
      %v877 = vsel %vm876, %v873, %v746
      %vm878 = vcmp.lt.s32.totalorder %v875, %v748
      %v879 = vsel %vm878, %v875, %v748
      %vm880 = vcmp.lt.s32.totalorder %v877, %v750
      %v881 = vsel %vm880, %v877, %v750
      %vm882 = vcmp.lt.s32.totalorder %v879, %v752
      %v883 = vsel %vm882, %v879, %v752
      %vm884 = vcmp.lt.s32.totalorder %v881, %v754
      %v885 = vsel %vm884, %v881, %v754
      %vm886 = vcmp.lt.s32.totalorder %v883, %v756
      %v887 = vsel %vm886, %v883, %v756
      %vm888 = vcmp.lt.s32.totalorder %v885, %v758
      %v889 = vsel %vm888, %v885, %v758
      %vm890 = vcmp.lt.s32.totalorder %v887, %v760
      %v891 = vsel %vm890, %v887, %v760
      %vm892 = vcmp.lt.s32.totalorder %v889, %v762
      %v893 = vsel %vm892, %v889, %v762
      %vm894 = vcmp.lt.s32.totalorder %v891, %v764
      %v895 = vsel %vm894, %v891, %v764
      %vm896 = vcmp.lt.s32.totalorder %v893, %v766
      %v897 = vsel %vm896, %v893, %v766
      %vm898 = vcmp.lt.s32.totalorder %v895, %v768
      %v899 = vsel %vm898, %v895, %v768
      %vm900 = vcmp.lt.s32.totalorder %v897, %v770
      %v901 = vsel %vm900, %v897, %v770
      %vm902 = vcmp.lt.s32.totalorder %v899, %v772
      %v903 = vsel %vm902, %v899, %v772
      %vm904 = vcmp.lt.s32.totalorder %v901, %v774
      %v905 = vsel %vm904, %v901, %v774
      %vm906 = vcmp.lt.s32.totalorder %v903, %v776
      %v907 = vsel %vm906, %v903, %v776
      %vm908 = vcmp.lt.s32.totalorder %v905, %v778
      %v909 = vsel %vm908, %v905, %v778
      %vm910 = vcmp.lt.s32.totalorder %v907, %v780
      %v911 = vsel %vm910, %v907, %v780
      %vm912 = vcmp.lt.s32.totalorder %v909, %v782
      %v913 = vsel %vm912, %v909, %v782
      %vm914 = vcmp.lt.s32.totalorder %v911, %v913
      %v915 = vsel %vm914, %v911, %v913
      %v916 = vrot.slane %v915, 4
      %vm917 = vcmp.lt.s32.totalorder %v915, %v916
      %v918 = vsel %vm917, %v915, %v916
      %v919 = vrot.slane %v918, 2
      %vm920 = vcmp.lt.s32.totalorder %v918, %v919
      %v921 = vsel %vm920, %v918, %v919
      %v922 = vrot.slane %v921, 1
      %vm923 = vcmp.lt.s32.totalorder %v921, %v922
      %v924 = vsel %vm923, %v921, %v922
      %v925 = vcombine.low %v853, %v924
      %v927 = vunpack.c.l.s4 1966171168
      %v928 = vunpack.c.0.s8 %v927
      %v929 = vlaneseq
      %v930 = vshrl.u32 %v929, 7
      %v931 = vsub.s32 %v928, %v930
      %v932 = vrot.slane %v925, %v931
      %v934 = vunpack.c.l.s4 1966171168
      %v935 = vunpack.c.0.s8 %v934
      %v936 = vlaneseq
      %v937 = vshrl.u32 %v936, 7
      %v938 = vsub.s32 %v935, %v937
      %v939 = vrot.slane %v932, %v938
      %v940 = vlaneseq
      %vm941 = vcmp.ge.s32.totalorder %v940, 0
      %vm942 = vcmp.lt.s32.totalorder %v940, 256
      %vm943 = vmand %vm941, %vm942
      %944 = vst.msk [vmem:[%s199] sm:$0x3] %vm943, %v939
      %s945 = smul.u32 2, %s18
      %p946 = scmp.lt.s32.totalorder %s17, 1
      %s947 = scalar_select %p946, %s17, 1
      %p948 = scmp.lt.s32.totalorder %s945, 1
      %s949 = scalar_select %p948, %s945, 1
      %s950 = smul.addr %s947, 2
      %s951 = sadd.s32 %s949, %s950
      %s952 = scalar_lea.vmem %s2, %s951
      // Predicated region
      $region29: #{run.2} parent=27 // pred_check
        %p953 = pneg %p99
      $region30: #{run.2} parent=27 // pred_check_branch
        %955 = sbr.rel (%p953) target = $region32
      $region31: #{run.2} parent=27 // pred_region
        %s956 = smul.u32 2, %s18
      $region32: #{run.2} parent=27 // pred_fallthru
        _
    $region28: #{run.2} parent=5 // pred_fallthru
      _
    %p957 = scmp.le.s32.totalorder 2, %s8
    // Predicated region
    $region33: #{run.2} parent=5 // pred_check
      %p958 = pneg %p957
    $region34: #{run.2} parent=5 // pred_check_branch
      %960 = sbr.rel (%p958) target = $region36
    $region35: #{run.2} parent=5 // pred_region
      %s961 = ssub.s32 %s8, 2
      // Predicated region
      $region37: #{run.2} parent=35 // pred_check
        %p962 = pneg %p105
      $region38: #{run.2} parent=35 // pred_check_branch
        %964 = sbr.rel (%p962) target = $region40
      $region39: #{run.2} parent=35 // pred_region
        %s965 = smul.u32 2, %s20
        %p966 = scmp.lt.s32.totalorder %s19, 1
        %s967 = scalar_select %p966, %s19, 1
        %p968 = scmp.lt.s32.totalorder %s965, 1
        %s969 = scalar_select %p968, %s965, 1
        %s970 = smul.addr %s967, 2
        %s971 = sadd.s32 %s969, %s970
        %s972 = scalar_lea.vmem %s2, %s971
      $region40: #{run.2} parent=35 // pred_fallthru
        _
    $region36: #{run.2} parent=5 // pred_fallthru
      _
  $region6: #{run.2} parent=0 // loop_footer
    %s12 = sadd.s32 1, %s8
  $region7: #{run.2} parent=0 // loop_footer_branch
    %7 = sbr.rel target = $region3
  $region8: #{run.2} parent=0 // loop_exit
    _

// kernel: run.3
$region0: #{run.3}
  #allocation0 [shape = 'u32[]', space=smem, size = 0x4, offset = 0x4, fixed_abs, tag = 'smem constant byte address 0x4 - core index']
  #allocation1 [shape = 'u32[144,128]{1,0:T(1,128)}', space=vmem, size = 0x12000, scoped, tag = 'internal scratch']
  %s0 = inlined_call_operand.vmem [shape: bf16[2,48,256], index: 0, kind: input, shape index: {}]
  %s1 = inlined_call_operand.vmem [shape: bf16[2,48,256], index: 1, kind: input, shape index: {}]
  %s2 = inlined_call_operand.vmem [shape: f32[2,2,256], index: 2, kind: output, shape index: {0}]
  %s3 = inlined_call_operand.vmem [shape: s32[2,2,256], index: 3, kind: output, shape index: {1}]
  %4 = xla_tuple %s2, %s3
  %s5 = sld [smem:[#allocation0]]
  $region49: #{run.3} parent=0
    _
  %s7 = ssub.s32 1, %s5
  %s8 = scalar_select 0, %s7, %s5
  loop: start=0, step=1, limit=4
  $region2: #{run.3} parent=0 // loop_pre_header
    _
  $region3: #{run.3} parent=0 // loop_header
    %s10 = sphi 0, %s14
    %p11 = scmp.ge.s32.totalorder %s10, 4
    %s17 = sphi 0, %s29
    %s18 = sphi 0, %s25
    %s19 = sphi 0, %s17
    %s20 = sphi 0, %s18
    %s21 = sphi 0, %s19
    %s22 = sphi 0, %s20
    %s32 = sphi 0, %s34
    %s35 = sphi 0, %s32
    %s36 = sphi 0, %s35
    %s52 = sphi 0, %s36
    %s60 = sphi 0, %s62
    %s63 = sphi 0, %s60
    %s64 = sphi 0, %s63
    %s80 = sphi 0, %s64
    %s88 = sphi 0, %s90
    %s91 = sphi 0, %s88
    %s92 = sphi 0, %s91
    %s108 = sphi 0, %s92
    %s116 = sphi 0, %s118
    %s119 = sphi 0, %s116
    %s120 = sphi 0, %s119
    %s136 = sphi 0, %s120
  $region4: #{run.3} parent=0 // loop_header_branch
    %13 = sbr.rel (%p11) target = $region8
  $region5: #{run.3} parent=0 // loop_body
    %s15 = ssub.s32 %s10, 1
    %s16 = ssub.s32 %s10, 2
    %s23 = sadd.s32 1, %s18
    %p24 = scmp.ge.s32.totalorder %s23, 1
    %s25 = scalar_select %p24, 0, %s23
    %s26 = sadd.s32 1, %s17
    %s27 = scalar_select %p24, %s26, %s17
    %p28 = scmp.ge.s32.totalorder %s27, 2
    %s29 = scalar_select %p28, 0, %s27
    %s30 = ssub.s32 %s17, %s29
    %p31 = scmp.eq.s32.totalorder %s30, 0
    %s33 = sadd.s32 %s32, 1
    %s34 = scalar_select %p31, %s32, %s33
    %p37 = pneg %p31
    %p38 = scmp.eq.s32.totalorder %s10, 1
    %p39 = por %p37, %p38
    %p40 = scmp.ne.s32.totalorder %s32, %s35
    %p41 = scmp.eq.s32.totalorder %s10, 0
    %p42 = por %p40, %p41
    %p43 = scmp.ne.s32.totalorder %s32, %s35
    %p44 = scmp.eq.s32.totalorder %s15, 1
    %p45 = por %p43, %p44
    %p46 = scmp.ne.s32.totalorder %s35, %s36
    %p47 = scmp.eq.s32.totalorder %s15, 0
    %p48 = por %p46, %p47
    %p49 = scmp.ne.s32.totalorder %s35, %s36
    %p50 = scmp.eq.s32.totalorder %s16, 1
    %p51 = por %p49, %p50
    %p53 = scmp.ne.s32.totalorder %s36, %s52
    %p54 = scmp.eq.s32.totalorder %s16, 0
    %p55 = por %p53, %p54
    %s56 = ssub.s32 %s17, %s29
    %s57 = ssub.s32 %s18, %s25
    %s58 = sor.u32 %s56, %s57
    %p59 = scmp.eq.s32.totalorder %s58, 0
    %s61 = sadd.s32 %s60, 1
    %s62 = scalar_select %p59, %s60, %s61
    %p65 = pneg %p59
    %p66 = scmp.eq.s32.totalorder %s10, 1
    %p67 = por %p65, %p66
    %p68 = scmp.ne.s32.totalorder %s60, %s63
    %p69 = scmp.eq.s32.totalorder %s10, 0
    %p70 = por %p68, %p69
    %p71 = scmp.ne.s32.totalorder %s60, %s63
    %p72 = scmp.eq.s32.totalorder %s15, 1
    %p73 = por %p71, %p72
    %p74 = scmp.ne.s32.totalorder %s63, %s64
    %p75 = scmp.eq.s32.totalorder %s15, 0
    %p76 = por %p74, %p75
    %p77 = scmp.ne.s32.totalorder %s63, %s64
    %p78 = scmp.eq.s32.totalorder %s16, 1
    %p79 = por %p77, %p78
    %p81 = scmp.ne.s32.totalorder %s64, %s80
    %p82 = scmp.eq.s32.totalorder %s16, 0
    %p83 = por %p81, %p82
    %s84 = ssub.s32 %s17, %s29
    %s85 = ssub.s32 %s18, %s25
    %s86 = sor.u32 %s84, %s85
    %p87 = scmp.eq.s32.totalorder %s86, 0
    %s89 = sadd.s32 %s88, 1
    %s90 = scalar_select %p87, %s88, %s89
    %p93 = pneg %p87
    %p94 = scmp.eq.s32.totalorder %s10, 1
    %p95 = por %p93, %p94
    %p96 = scmp.ne.s32.totalorder %s88, %s91
    %p97 = scmp.eq.s32.totalorder %s10, 0
    %p98 = por %p96, %p97
    %p99 = scmp.ne.s32.totalorder %s88, %s91
    %p100 = scmp.eq.s32.totalorder %s15, 1
    %p101 = por %p99, %p100
    %p102 = scmp.ne.s32.totalorder %s91, %s92
    %p103 = scmp.eq.s32.totalorder %s15, 0
    %p104 = por %p102, %p103
    %p105 = scmp.ne.s32.totalorder %s91, %s92
    %p106 = scmp.eq.s32.totalorder %s16, 1
    %p107 = por %p105, %p106
    %p109 = scmp.ne.s32.totalorder %s92, %s108
    %p110 = scmp.eq.s32.totalorder %s16, 0
    %p111 = por %p109, %p110
    %s112 = ssub.s32 %s17, %s29
    %s113 = ssub.s32 %s18, %s25
    %s114 = sor.u32 %s112, %s113
    %p115 = scmp.eq.s32.totalorder %s114, 0
    %s117 = sadd.s32 %s116, 1
    %s118 = scalar_select %p115, %s116, %s117
    %p121 = pneg %p115
    %p122 = scmp.eq.s32.totalorder %s10, 1
    %p123 = por %p121, %p122
    %p124 = scmp.ne.s32.totalorder %s116, %s119
    %p125 = scmp.eq.s32.totalorder %s10, 0
    %p126 = por %p124, %p125
    %p127 = scmp.ne.s32.totalorder %s116, %s119
    %p128 = scmp.eq.s32.totalorder %s15, 1
    %p129 = por %p127, %p128
    %p130 = scmp.ne.s32.totalorder %s119, %s120
    %p131 = scmp.eq.s32.totalorder %s15, 0
    %p132 = por %p130, %p131
    %p133 = scmp.ne.s32.totalorder %s119, %s120
    %p134 = scmp.eq.s32.totalorder %s16, 1
    %p135 = por %p133, %p134
    %p137 = scmp.ne.s32.totalorder %s120, %s136
    %p138 = scmp.eq.s32.totalorder %s16, 0
    %p139 = por %p137, %p138
    %p140 = scmp.le.s32.totalorder 1, %s10
    %p141 = scmp.lt.s32.totalorder %s10, 3
    %p142 = pnand %p140, %p141
    %p143 = pneg %p142
    // Predicated region
    $region9: #{run.3} parent=5 // pred_check
      _
    $region10: #{run.3} parent=5 // pred_check_branch
      %145 = sbr.rel (%p142) target = $region12
    $region11: #{run.3} parent=5 // pred_region
      %s146 = ssub.s32 %s10, 1
    $region12: #{run.3} parent=5 // pred_fallthru
      _
    %p147 = scmp.lt.s32.totalorder %s10, 2
    // Predicated region
    $region13: #{run.3} parent=5 // pred_check
      %p148 = pneg %p147
    $region14: #{run.3} parent=5 // pred_check_branch
      %150 = sbr.rel (%p148) target = $region16
    $region15: #{run.3} parent=5 // pred_region
      // Predicated region
      $region17: #{run.3} parent=15 // pred_check
        %p151 = pneg %p42
      $region18: #{run.3} parent=15 // pred_check_branch
        %153 = sbr.rel (%p151) target = $region20
      $region19: #{run.3} parent=15 // pred_region
        %p154 = scmp.lt.s32.totalorder %s17, 1
        %s155 = scalar_select %p154, %s17, 1
        %s156 = smul.addr %s155, 12
        %s157 = smul.addr %s156, 4
        %s158 = scalar_lea.vmem %s0, %s157
      $region20: #{run.3} parent=15 // pred_fallthru
        _
      // Predicated region
      $region21: #{run.3} parent=15 // pred_check
        %p159 = pneg %p70
      $region22: #{run.3} parent=15 // pred_check_branch
        %161 = sbr.rel (%p159) target = $region24
      $region23: #{run.3} parent=15 // pred_region
        %s162 = smul.u32 2, %s18
        %p163 = scmp.lt.s32.totalorder %s17, 1
        %s164 = scalar_select %p163, %s17, 1
        %p165 = scmp.lt.s32.totalorder %s162, 1
        %s166 = scalar_select %p165, %s162, 1
        %s167 = smul.addr %s164, 12
        %s168 = sadd.s32 %s166, %s167
        %s169 = smul.addr %s168, 4
        %s170 = scalar_lea.vmem %s1, %s169
        %s171 = smul.u32 2, %s18
      $region24: #{run.3} parent=15 // pred_fallthru
        _
    $region16: #{run.3} parent=5 // pred_fallthru
      _
    %p172 = scmp.le.s32.totalorder 1, %s10
    %p173 = scmp.lt.s32.totalorder %s10, 3
    %p174 = pnand %p172, %p173
    %p175 = pneg %p174
    // Predicated region
    $region25: #{run.3} parent=5 // pred_check
      _
    $region26: #{run.3} parent=5 // pred_check_branch
      %177 = sbr.rel (%p174) target = $region28
    $region27: #{run.3} parent=5 // pred_region
      %s178 = ssub.s32 %s10, 1
      %p179 = scmp.lt.s32.totalorder %s19, 1
      %s180 = scalar_select %p179, %s19, 1
      %s181 = smul.addr %s180, 12
      %s182 = smul.addr %s181, 4
      %s183 = scalar_lea.vmem %s0, %s182
      %p184 = pneg %p48
      %p185 = pneg %p45
      %s186 = smul.u32 2, %s20
      %p187 = scmp.lt.s32.totalorder %s19, 1
      %s188 = scalar_select %p187, %s19, 1
      %p189 = scmp.lt.s32.totalorder %s186, 1
      %s190 = scalar_select %p189, %s186, 1
      %s191 = smul.addr %s188, 12
      %s192 = sadd.s32 %s190, %s191
      %s193 = smul.addr %s192, 4
      %s194 = scalar_lea.vmem %s1, %s193
      %p195 = pneg %p76
      %p196 = pneg %p73
      %p197 = pneg %p104
      %p198 = pneg %p101
      %s199 = smul.u32 2, %s20
      %p200 = scmp.lt.s32.totalorder %s19, 1
      %s201 = scalar_select %p200, %s19, 1
      %p202 = scmp.lt.s32.totalorder %s199, 1
      %s203 = scalar_select %p202, %s199, 1
      %s204 = smul.addr %s201, 2
      %s205 = sadd.s32 %s203, %s204
      %s206 = smul.addr %s205, 2
      %s207 = scalar_lea.vmem %s2, %s206
      %p208 = pneg %p132
      %p209 = pneg %p129
      %s210 = smul.u32 2, %s20
      %p211 = scmp.lt.s32.totalorder %s19, 1
      %s212 = scalar_select %p211, %s19, 1
      %p213 = scmp.lt.s32.totalorder %s210, 1
      %s214 = scalar_select %p213, %s210, 1
      %s215 = smul.addr %s212, 2
      %s216 = sadd.s32 %s214, %s215
      %s217 = smul.addr %s216, 2
      %s218 = scalar_lea.vmem %s3, %s217
      %p219 = scmp.lt.s32.totalorder %s19, 1
      %s220 = scalar_select %p219, %s19, 1
      %s221 = smul.addr %s220, 12
      %s222 = smul.addr %s221, 4
      %s223 = scalar_lea.vmem %s0, %s222
      %s224 = smul.u32 2, %s20
      %p225 = scmp.lt.s32.totalorder %s19, 1
      %s226 = scalar_select %p225, %s19, 1
      %p227 = scmp.lt.s32.totalorder %s224, 1
      %s228 = scalar_select %p227, %s224, 1
      %s229 = smul.addr %s226, 12
      %s230 = sadd.s32 %s228, %s229
      %s231 = smul.addr %s230, 4
      %s232 = scalar_lea.vmem %s1, %s231
      %s233 = smul.u32 2, %s20
      %s234 = smul.u32 2, %s20
      %p235 = scmp.lt.s32.totalorder %s19, 1
      %s236 = scalar_select %p235, %s19, 1
      %p237 = scmp.lt.s32.totalorder %s234, 1
      %s238 = scalar_select %p237, %s234, 1
      %s239 = smul.addr %s236, 2
      %s240 = sadd.s32 %s238, %s239
      %s241 = smul.addr %s240, 2
      %s242 = scalar_lea.vmem %s2, %s241
      %s243 = smul.u32 2, %s20
      %s244 = smul.u32 2, %s20
      %p245 = scmp.lt.s32.totalorder %s19, 1
      %s246 = scalar_select %p245, %s19, 1
      %p247 = scmp.lt.s32.totalorder %s244, 1
      %s248 = scalar_select %p247, %s244, 1
      %s249 = smul.addr %s246, 2
      %s250 = sadd.s32 %s248, %s249
      %s251 = smul.addr %s250, 2
      %s252 = scalar_lea.vmem %s3, %s251
      %s253 = smul.u32 2, %s20
      %v255 = vld [vmem:[%s223] sm:$0xff]
      %v256 = vld [vmem:[%s223 + $0x8] sm:$0xff]
      %v257 = vld [vmem:[%s223 + $0x10] sm:$0xff]
      %v258 = vld [vmem:[%s223 + $0x18] sm:$0xff]
      %v259 = vld [vmem:[%s223 + $0x20] sm:$0xff]
      %v260 = vld [vmem:[%s223 + $0x28] sm:$0xff]
      %v261 = vld [vmem:[%s232] sm:$0xff]
      %v262 = vld [vmem:[%s232 + $0x8] sm:$0xff]
      %v263 = vld [vmem:[%s232 + $0x10] sm:$0xff]
      %v264 = vld [vmem:[%s232 + $0x18] sm:$0xff]
      %v265 = vld [vmem:[%s232 + $0x20] sm:$0xff]
      %v266 = vld [vmem:[%s232 + $0x28] sm:$0xff]
      %v273 = vunpack.c.l.b16 %v255
      %v274 = vunpack.c.h.b16 %v255
      %v275 = vunpack.c.l.b16 %v256
      %v276 = vunpack.c.h.b16 %v256
      %v277 = vunpack.c.l.b16 %v257
      %v278 = vunpack.c.h.b16 %v257
      %v279 = vunpack.c.l.b16 %v258
      %v280 = vunpack.c.h.b16 %v258
      %v281 = vunpack.c.l.b16 %v259
      %v282 = vunpack.c.h.b16 %v259
      %v283 = vunpack.c.l.b16 %v260
      %v284 = vunpack.c.h.b16 %v260
      %v285 = vpack.c.b16 %v275, %v273
      %v286 = vpack.c.b16 %v276, %v274
      %v287 = vpack.c.b16 %v279, %v277
      %v288 = vpack.c.b16 %v280, %v278
      %v289 = vpack.c.b16 %v283, %v281
      %v290 = vpack.c.b16 %v284, %v282
      %297 = vxpose.xlu0.c.b16.start [1/8] %v285, 128
      %298 = vxpose.xlu0.c.b16.cont [2/8] %v287, 128
      %299 = vxpose.xlu0.c.b16.cont [3/8] %v289, 128
      %300 = vxpose.xlu0.c.b16.cont [4/8] 0, 128
      %301 = vxpose.xlu0.c.b16.cont [5/8] 0, 128
      %302 = vxpose.xlu0.c.b16.cont [6/8] 0, 128
      %303 = vxpose.xlu0.c.b16.cont [7/8] 0, 128
      %304 = vxpose.xlu0.c.b16.end [8/8] 0, 128
      %v305 = vpop.trf.xlu0
      %v306 = vpop.trf.xlu0
      %v307 = vpop.trf.xlu0
      %v308 = vpop.trf.xlu0
      %v309 = vpop.trf.xlu0
      %v310 = vpop.trf.xlu0
      %v311 = vpop.trf.xlu0
      %v312 = vpop.trf.xlu0
      %313 = vxpose.xlu0.c.b16.start [1/8] %v286, 128
      %314 = vxpose.xlu0.c.b16.cont [2/8] %v288, 128
      %315 = vxpose.xlu0.c.b16.cont [3/8] %v290, 128
      %316 = vxpose.xlu0.c.b16.cont [4/8] 0, 128
      %317 = vxpose.xlu0.c.b16.cont [5/8] 0, 128
      %318 = vxpose.xlu0.c.b16.cont [6/8] 0, 128
      %319 = vxpose.xlu0.c.b16.cont [7/8] 0, 128
      %320 = vxpose.xlu0.c.b16.end [8/8] 0, 128
      %v321 = vpop.trf.xlu0
      %v322 = vpop.trf.xlu0
      %v323 = vpop.trf.xlu0
      %v324 = vpop.trf.xlu0
      %v325 = vpop.trf.xlu0
      %v326 = vpop.trf.xlu0
      %v327 = vpop.trf.xlu0
      %v328 = vpop.trf.xlu0
      %v335 = vunpack.c.l.b16 %v261
      %v336 = vunpack.c.h.b16 %v261
      %v337 = vunpack.c.l.b16 %v262
      %v338 = vunpack.c.h.b16 %v262
      %v339 = vunpack.c.l.b16 %v263
      %v340 = vunpack.c.h.b16 %v263
      %v341 = vunpack.c.l.b16 %v264
      %v342 = vunpack.c.h.b16 %v264
      %v343 = vunpack.c.l.b16 %v265
      %v344 = vunpack.c.h.b16 %v265
      %v345 = vunpack.c.l.b16 %v266
      %v346 = vunpack.c.h.b16 %v266
      %v347 = vpack.c.b16 %v337, %v335
      %v348 = vpack.c.b16 %v338, %v336
      %v349 = vpack.c.b16 %v341, %v339
      %v350 = vpack.c.b16 %v342, %v340
      %v351 = vpack.c.b16 %v345, %v343
      %v352 = vpack.c.b16 %v346, %v344
      %vm359 = vcmask 392192
      %v361 = vsel %vm359, %v305, 0
      %v364 = vsel %vm359, %v306, 0
      %v367 = vsel %vm359, %v307, 0
      %v370 = vsel %vm359, %v308, 0
      %v373 = vsel %vm359, %v309, 0
      %v376 = vsel %vm359, %v310, 0
      %v379 = vsel %vm359, %v311, 0
      %v382 = vsel %vm359, %v312, 0
      %v385 = vsel %vm359, %v321, 0
      %v388 = vsel %vm359, %v322, 0
      %v391 = vsel %vm359, %v323, 0
      %v394 = vsel %vm359, %v324, 0
      %v397 = vsel %vm359, %v325, 0
      %v400 = vsel %vm359, %v326, 0
      %v403 = vsel %vm359, %v327, 0
      %v406 = vsel %vm359, %v328, 0
      %408 = vmatprep.subr.bf16.mxu0 %v348
      %409 = vmatpush1.bf16.msra.mxu0 %v347
      %410 = vmatprep.subr.bf16.mxu0 %v350
      %411 = vmatpush1.bf16.msra.mxu0 %v349
      %412 = vmatprep.subr.bf16.mxu0 %v352
      %413 = vmatpush1.bf16.msra.mxu0 %v351
      %414 = vmatprep.subr.bf16.mxu0 0
      %415 = vmatpush1.bf16.msra.mxu0 0
      %416 = vmatprep.subr.bf16.mxu0 0
      %417 = vmatpush1.bf16.msra.mxu0 0
      %418 = vmatprep.subr.bf16.mxu0 0
      %419 = vmatpush1.bf16.msra.mxu0 0
      %420 = vmatprep.subr.bf16.mxu0 0
      %421 = vmatpush1.bf16.msra.mxu0 0
      %422 = vmatprep.subr.bf16.mxu0 0
      %423 = vmatpush1.bf16.msra.mxu0 0
      %424 = vmatprep.subr.bf16.mxu0 0
      %425 = vmatpush1.bf16.msra.mxu0 0
      %426 = vmatprep.subr.bf16.mxu0 0
      %427 = vmatpush1.bf16.msra.mxu0 0
      %428 = vmatprep.subr.bf16.mxu0 0
      %429 = vmatpush1.bf16.msra.mxu0 0
      %430 = vmatprep.subr.bf16.mxu0 0
      %431 = vmatpush1.bf16.msra.mxu0 0
      %432 = vmatprep.subr.bf16.mxu0 0
      %433 = vmatpush1.bf16.msra.mxu0 0
      %434 = vmatprep.subr.bf16.mxu0 0
      %435 = vmatpush1.bf16.msra.mxu0 0
      %436 = vmatprep.subr.bf16.mxu0 0
      %437 = vmatpush1.bf16.msra.mxu0 0
      %438 = vmatprep.subr.bf16.mxu0 0
      %439 = vmatpush1.bf16.msra.mxu0 0
      %440 = vmatprep.mubr.bf16.mxu0 0
      %441 = vmatmul.mubr.bf16.gmra.mrb[0].mxu0 %v361
      %v442 = vpop.f32.mrb[0].mxu0
      %v443 = vadd.f32 0.0, %v442
      %v444 = vpop.f32.mrb[0].mxu0
      %v445 = vadd.f32 0.0, %v444
      %v446 = vpop.f32.mrb[0].mxu0
      %v447 = vadd.f32 0.0, %v446
      %v448 = vpop.f32.mrb[0].mxu0
      %v449 = vadd.f32 0.0, %v448
      %450 = vmatprep.mubr.bf16.mxu0 0
      %451 = vmatmul.mubr.bf16.gmra.mrb[0].mxu0 %v364
      %v452 = vpop.f32.mrb[0].mxu0
      %v453 = vadd.f32 0.0, %v452
      %v454 = vpop.f32.mrb[0].mxu0
      %v455 = vadd.f32 0.0, %v454
      %v456 = vpop.f32.mrb[0].mxu0
      %v457 = vadd.f32 0.0, %v456
      %v458 = vpop.f32.mrb[0].mxu0
      %v459 = vadd.f32 0.0, %v458
      %460 = vmatprep.mubr.bf16.mxu0 0
      %461 = vmatmul.mubr.bf16.gmra.mrb[0].mxu0 %v367
      %v462 = vpop.f32.mrb[0].mxu0
      %v463 = vadd.f32 0.0, %v462
      %v464 = vpop.f32.mrb[0].mxu0
      %v465 = vadd.f32 0.0, %v464
      %v466 = vpop.f32.mrb[0].mxu0
      %v467 = vadd.f32 0.0, %v466
      %v468 = vpop.f32.mrb[0].mxu0
      %v469 = vadd.f32 0.0, %v468
      %470 = vmatprep.mubr.bf16.mxu0 0
      %471 = vmatmul.mubr.bf16.gmra.mrb[0].mxu0 %v370
      %v472 = vpop.f32.mrb[0].mxu0
      %v473 = vadd.f32 0.0, %v472
      %v474 = vpop.f32.mrb[0].mxu0
      %v475 = vadd.f32 0.0, %v474
      %v476 = vpop.f32.mrb[0].mxu0
      %v477 = vadd.f32 0.0, %v476
      %v478 = vpop.f32.mrb[0].mxu0
      %v479 = vadd.f32 0.0, %v478
      %480 = vmatprep.mubr.bf16.mxu0 0
      %481 = vmatmul.mubr.bf16.gmra.mrb[0].mxu0 %v373
      %v482 = vpop.f32.mrb[0].mxu0
      %v483 = vadd.f32 0.0, %v482
      %v484 = vpop.f32.mrb[0].mxu0
      %v485 = vadd.f32 0.0, %v484
      %v486 = vpop.f32.mrb[0].mxu0
      %v487 = vadd.f32 0.0, %v486
      %v488 = vpop.f32.mrb[0].mxu0
      %v489 = vadd.f32 0.0, %v488
      %490 = vmatprep.mubr.bf16.mxu0 0
      %491 = vmatmul.mubr.bf16.gmra.mrb[0].mxu0 %v376
      %v492 = vpop.f32.mrb[0].mxu0
      %v493 = vadd.f32 0.0, %v492
      %v494 = vpop.f32.mrb[0].mxu0
      %v495 = vadd.f32 0.0, %v494
      %v496 = vpop.f32.mrb[0].mxu0
      %v497 = vadd.f32 0.0, %v496
      %v498 = vpop.f32.mrb[0].mxu0
      %v499 = vadd.f32 0.0, %v498
      %500 = vmatprep.mubr.bf16.mxu0 0
      %501 = vmatmul.mubr.bf16.gmra.mrb[0].mxu0 %v379
      %v502 = vpop.f32.mrb[0].mxu0
      %v503 = vadd.f32 0.0, %v502
      %v504 = vpop.f32.mrb[0].mxu0
      %v505 = vadd.f32 0.0, %v504
      %v506 = vpop.f32.mrb[0].mxu0
      %v507 = vadd.f32 0.0, %v506
      %v508 = vpop.f32.mrb[0].mxu0
      %v509 = vadd.f32 0.0, %v508
      %510 = vmatprep.mubr.bf16.mxu0 0
      %511 = vmatmul.mubr.bf16.gmra.mrb[0].mxu0 %v382
      %v512 = vpop.f32.mrb[0].mxu0
      %v513 = vadd.f32 0.0, %v512
      %v514 = vpop.f32.mrb[0].mxu0
      %v515 = vadd.f32 0.0, %v514
      %v516 = vpop.f32.mrb[0].mxu0
      %v517 = vadd.f32 0.0, %v516
      %v518 = vpop.f32.mrb[0].mxu0
      %v519 = vadd.f32 0.0, %v518
      %520 = vmatprep.mubr.bf16.mxu0 0
      %521 = vmatmul.mubr.bf16.gmra.mrb[0].mxu0 %v385
      %v522 = vpop.f32.mrb[0].mxu0
      %v523 = vadd.f32 0.0, %v522
      %v524 = vpop.f32.mrb[0].mxu0
      %v525 = vadd.f32 0.0, %v524
      %v526 = vpop.f32.mrb[0].mxu0
      %v527 = vadd.f32 0.0, %v526
      %v528 = vpop.f32.mrb[0].mxu0
      %v529 = vadd.f32 0.0, %v528
      %530 = vmatprep.mubr.bf16.mxu0 0
      %531 = vmatmul.mubr.bf16.gmra.mrb[0].mxu0 %v388
      %v532 = vpop.f32.mrb[0].mxu0
      %v533 = vadd.f32 0.0, %v532
      %v534 = vpop.f32.mrb[0].mxu0
      %v535 = vadd.f32 0.0, %v534
      %v536 = vpop.f32.mrb[0].mxu0
      %v537 = vadd.f32 0.0, %v536
      %v538 = vpop.f32.mrb[0].mxu0
      %v539 = vadd.f32 0.0, %v538
      %540 = vmatprep.mubr.bf16.mxu0 0
      %541 = vmatmul.mubr.bf16.gmra.mrb[0].mxu0 %v391
      %v542 = vpop.f32.mrb[0].mxu0
      %v543 = vadd.f32 0.0, %v542
      %v544 = vpop.f32.mrb[0].mxu0
      %v545 = vadd.f32 0.0, %v544
      %v546 = vpop.f32.mrb[0].mxu0
      %v547 = vadd.f32 0.0, %v546
      %v548 = vpop.f32.mrb[0].mxu0
      %v549 = vadd.f32 0.0, %v548
      %550 = vmatprep.mubr.bf16.mxu0 0
      %551 = vmatmul.mubr.bf16.gmra.mrb[0].mxu0 %v394
      %v552 = vpop.f32.mrb[0].mxu0
      %v553 = vadd.f32 0.0, %v552
      %v554 = vpop.f32.mrb[0].mxu0
      %v555 = vadd.f32 0.0, %v554
      %v556 = vpop.f32.mrb[0].mxu0
      %v557 = vadd.f32 0.0, %v556
      %v558 = vpop.f32.mrb[0].mxu0
      %v559 = vadd.f32 0.0, %v558
      %560 = vmatprep.mubr.bf16.mxu0 0
      %561 = vmatmul.mubr.bf16.gmra.mrb[0].mxu0 %v397
      %v562 = vpop.f32.mrb[0].mxu0
      %v563 = vadd.f32 0.0, %v562
      %v564 = vpop.f32.mrb[0].mxu0
      %v565 = vadd.f32 0.0, %v564
      %v566 = vpop.f32.mrb[0].mxu0
      %v567 = vadd.f32 0.0, %v566
      %v568 = vpop.f32.mrb[0].mxu0
      %v569 = vadd.f32 0.0, %v568
      %570 = vmatprep.mubr.bf16.mxu0 0
      %571 = vmatmul.mubr.bf16.gmra.mrb[0].mxu0 %v400
      %v572 = vpop.f32.mrb[0].mxu0
      %v573 = vadd.f32 0.0, %v572
      %v574 = vpop.f32.mrb[0].mxu0
      %v575 = vadd.f32 0.0, %v574
      %v576 = vpop.f32.mrb[0].mxu0
      %v577 = vadd.f32 0.0, %v576
      %v578 = vpop.f32.mrb[0].mxu0
      %v579 = vadd.f32 0.0, %v578
      %580 = vmatprep.mubr.bf16.mxu0 0
      %581 = vmatmul.mubr.bf16.gmra.mrb[0].mxu0 %v403
      %v582 = vpop.f32.mrb[0].mxu0
      %v583 = vadd.f32 0.0, %v582
      %v584 = vpop.f32.mrb[0].mxu0
      %v585 = vadd.f32 0.0, %v584
      %v586 = vpop.f32.mrb[0].mxu0
      %v587 = vadd.f32 0.0, %v586
      %v588 = vpop.f32.mrb[0].mxu0
      %v589 = vadd.f32 0.0, %v588
      %590 = vmatprep.mubr.bf16.mxu0 0
      %591 = vmatmul.mubr.bf16.gmra.mrb[0].mxu0 %v406
      %v592 = vpop.f32.mrb[0].mxu0
      %v593 = vadd.f32 0.0, %v592
      %v594 = vpop.f32.mrb[0].mxu0
      %v595 = vadd.f32 0.0, %v594
      %v596 = vpop.f32.mrb[0].mxu0
      %v597 = vadd.f32 0.0, %v596
      %v598 = vpop.f32.mrb[0].mxu0
      %v599 = vadd.f32 0.0, %v598
      %600 = vdwg.mxu0
      %v601 = vlaneseq
      %v602 = vshrl.u32 %v601, 7
      %v603 = vadd.s32 %v602, 8
      %v604 = vadd.s32 %v602, 16
      %v605 = vadd.s32 %v602, 24
      %v606 = vadd.s32 %v602, 32
      %v607 = vadd.s32 %v602, 40
      %v608 = vadd.s32 %v602, 48
      %v609 = vadd.s32 %v602, 56
      %v610 = vadd.s32 %v602, 64
      %v611 = vadd.s32 %v602, 72
      %v612 = vadd.s32 %v602, 80
      %v613 = vadd.s32 %v602, 88
      %v614 = vadd.s32 %v602, 96
      %v615 = vadd.s32 %v602, 104
      %v616 = vadd.s32 %v602, 112
      %v617 = vadd.s32 %v602, 120
      %v618 = vadd.s32 %v602, 128
      %v619 = vadd.s32 %v602, 136
      %v620 = vadd.s32 %v602, 144
      %v621 = vadd.s32 %v602, 152
      %v622 = vadd.s32 %v602, 160
      %v623 = vadd.s32 %v602, 168
      %v624 = vadd.s32 %v602, 176
      %v625 = vadd.s32 %v602, 184
      %v626 = vadd.s32 %v602, 192
      %v627 = vadd.s32 %v602, 200
      %v628 = vadd.s32 %v602, 208
      %v629 = vadd.s32 %v602, 216
      %v630 = vadd.s32 %v602, 224
      %v631 = vadd.s32 %v602, 232
      %v632 = vadd.s32 %v602, 240
      %v633 = vadd.s32 %v602, 248
      %v634 = vmax.f32 %v443, %v453
      %v635 = vmax.f32 %v447, %v457
      %v636 = vmax.f32 %v634, %v463
      %v637 = vmax.f32 %v635, %v467
      %v638 = vmax.f32 %v636, %v473
      %v639 = vmax.f32 %v637, %v477
      %v640 = vmax.f32 %v638, %v483
      %v641 = vmax.f32 %v639, %v487
      %v642 = vmax.f32 %v640, %v493
      %v643 = vmax.f32 %v641, %v497
      %v644 = vmax.f32 %v642, %v503
      %v645 = vmax.f32 %v643, %v507
      %v646 = vmax.f32 %v644, %v513
      %v647 = vmax.f32 %v645, %v517
      %v648 = vmax.f32 %v646, %v523
      %v649 = vmax.f32 %v647, %v527
      %v650 = vmax.f32 %v648, %v533
      %v651 = vmax.f32 %v649, %v537
      %v652 = vmax.f32 %v650, %v543
      %v653 = vmax.f32 %v651, %v547
      %v654 = vmax.f32 %v652, %v553
      %v655 = vmax.f32 %v653, %v557
      %v656 = vmax.f32 %v654, %v563
      %v657 = vmax.f32 %v655, %v567
      %v658 = vmax.f32 %v656, %v573
      %v659 = vmax.f32 %v657, %v577
      %v660 = vmax.f32 %v658, %v583
      %v661 = vmax.f32 %v659, %v587
      %v662 = vmax.f32 %v660, %v593
      %v663 = vmax.f32 %v661, %v597
      %v664 = vmax.f32 %v662, %v663
      %v665 = vrot.slane %v664, 4
      %v666 = vmax.f32 %v664, %v665
      %v667 = vrot.slane %v666, 2
      %v668 = vmax.f32 %v666, %v667
      %v669 = vrot.slane %v668, 1
      %v670 = vmax.f32 %v668, %v669
      %v671 = vmax.f32 %v445, %v455
      %v672 = vmax.f32 %v449, %v459
      %v673 = vmax.f32 %v671, %v465
      %v674 = vmax.f32 %v672, %v469
      %v675 = vmax.f32 %v673, %v475
      %v676 = vmax.f32 %v674, %v479
      %v677 = vmax.f32 %v675, %v485
      %v678 = vmax.f32 %v676, %v489
      %v679 = vmax.f32 %v677, %v495
      %v680 = vmax.f32 %v678, %v499
      %v681 = vmax.f32 %v679, %v505
      %v682 = vmax.f32 %v680, %v509
      %v683 = vmax.f32 %v681, %v515
      %v684 = vmax.f32 %v682, %v519
      %v685 = vmax.f32 %v683, %v525
      %v686 = vmax.f32 %v684, %v529
      %v687 = vmax.f32 %v685, %v535
      %v688 = vmax.f32 %v686, %v539
      %v689 = vmax.f32 %v687, %v545
      %v690 = vmax.f32 %v688, %v549
      %v691 = vmax.f32 %v689, %v555
      %v692 = vmax.f32 %v690, %v559
      %v693 = vmax.f32 %v691, %v565
      %v694 = vmax.f32 %v692, %v569
      %v695 = vmax.f32 %v693, %v575
      %v696 = vmax.f32 %v694, %v579
      %v697 = vmax.f32 %v695, %v585
      %v698 = vmax.f32 %v696, %v589
      %v699 = vmax.f32 %v697, %v595
      %v700 = vmax.f32 %v698, %v599
      %v701 = vmax.f32 %v699, %v700
      %v702 = vrot.slane %v701, 4
      %v703 = vmax.f32 %v701, %v702
      %v704 = vrot.slane %v703, 2
      %v705 = vmax.f32 %v703, %v704
      %v706 = vrot.slane %v705, 1
      %v707 = vmax.f32 %v705, %v706
      %vm708 = vcmp.eq.f32.partialorder %v443, %v670
      %vm709 = vcmp.eq.f32.partialorder %v445, %v707
      %vm710 = vcmp.eq.f32.partialorder %v447, %v670
      %vm711 = vcmp.eq.f32.partialorder %v449, %v707
      %vm712 = vcmp.eq.f32.partialorder %v453, %v670
      %vm713 = vcmp.eq.f32.partialorder %v455, %v707
      %vm714 = vcmp.eq.f32.partialorder %v457, %v670
      %vm715 = vcmp.eq.f32.partialorder %v459, %v707
      %vm716 = vcmp.eq.f32.partialorder %v463, %v670
      %vm717 = vcmp.eq.f32.partialorder %v465, %v707
      %vm718 = vcmp.eq.f32.partialorder %v467, %v670
      %vm719 = vcmp.eq.f32.partialorder %v469, %v707
      %vm720 = vcmp.eq.f32.partialorder %v473, %v670
      %vm721 = vcmp.eq.f32.partialorder %v475, %v707
      %vm722 = vcmp.eq.f32.partialorder %v477, %v670
      %vm723 = vcmp.eq.f32.partialorder %v479, %v707
      %vm724 = vcmp.eq.f32.partialorder %v483, %v670
      %vm725 = vcmp.eq.f32.partialorder %v485, %v707
      %vm726 = vcmp.eq.f32.partialorder %v487, %v670
      %vm727 = vcmp.eq.f32.partialorder %v489, %v707
      %vm728 = vcmp.eq.f32.partialorder %v493, %v670
      %vm729 = vcmp.eq.f32.partialorder %v495, %v707
      %vm730 = vcmp.eq.f32.partialorder %v497, %v670
      %vm731 = vcmp.eq.f32.partialorder %v499, %v707
      %vm732 = vcmp.eq.f32.partialorder %v503, %v670
      %vm733 = vcmp.eq.f32.partialorder %v505, %v707
      %vm734 = vcmp.eq.f32.partialorder %v507, %v670
      %vm735 = vcmp.eq.f32.partialorder %v509, %v707
      %vm736 = vcmp.eq.f32.partialorder %v513, %v670
      %vm737 = vcmp.eq.f32.partialorder %v515, %v707
      %vm738 = vcmp.eq.f32.partialorder %v517, %v670
      %vm739 = vcmp.eq.f32.partialorder %v519, %v707
      %vm740 = vcmp.eq.f32.partialorder %v523, %v670
      %vm741 = vcmp.eq.f32.partialorder %v525, %v707
      %vm742 = vcmp.eq.f32.partialorder %v527, %v670
      %vm743 = vcmp.eq.f32.partialorder %v529, %v707
      %vm744 = vcmp.eq.f32.partialorder %v533, %v670
      %vm745 = vcmp.eq.f32.partialorder %v535, %v707
      %vm746 = vcmp.eq.f32.partialorder %v537, %v670
      %vm747 = vcmp.eq.f32.partialorder %v539, %v707
      %vm748 = vcmp.eq.f32.partialorder %v543, %v670
      %vm749 = vcmp.eq.f32.partialorder %v545, %v707
      %vm750 = vcmp.eq.f32.partialorder %v547, %v670
      %vm751 = vcmp.eq.f32.partialorder %v549, %v707
      %vm752 = vcmp.eq.f32.partialorder %v553, %v670
      %vm753 = vcmp.eq.f32.partialorder %v555, %v707
      %vm754 = vcmp.eq.f32.partialorder %v557, %v670
      %vm755 = vcmp.eq.f32.partialorder %v559, %v707
      %vm756 = vcmp.eq.f32.partialorder %v563, %v670
      %vm757 = vcmp.eq.f32.partialorder %v565, %v707
      %vm758 = vcmp.eq.f32.partialorder %v567, %v670
      %vm759 = vcmp.eq.f32.partialorder %v569, %v707
      %vm760 = vcmp.eq.f32.partialorder %v573, %v670
      %vm761 = vcmp.eq.f32.partialorder %v575, %v707
      %vm762 = vcmp.eq.f32.partialorder %v577, %v670
      %vm763 = vcmp.eq.f32.partialorder %v579, %v707
      %vm764 = vcmp.eq.f32.partialorder %v583, %v670
      %vm765 = vcmp.eq.f32.partialorder %v585, %v707
      %vm766 = vcmp.eq.f32.partialorder %v587, %v670
      %vm767 = vcmp.eq.f32.partialorder %v589, %v707
      %vm768 = vcmp.eq.f32.partialorder %v593, %v670
      %vm769 = vcmp.eq.f32.partialorder %v595, %v707
      %vm770 = vcmp.eq.f32.partialorder %v597, %v670
      %vm771 = vcmp.eq.f32.partialorder %v599, %v707
      %v772 = vsel %vm708, %v602, 256
      %v773 = vsel %vm709, %v602, 256
      %v774 = vsel %vm710, %v603, 256
      %v775 = vsel %vm711, %v603, 256
      %v776 = vsel %vm712, %v604, 256
      %v777 = vsel %vm713, %v604, 256
      %v778 = vsel %vm714, %v605, 256
      %v779 = vsel %vm715, %v605, 256
      %v780 = vsel %vm716, %v606, 256
      %v781 = vsel %vm717, %v606, 256
      %v782 = vsel %vm718, %v607, 256
      %v783 = vsel %vm719, %v607, 256
      %v784 = vsel %vm720, %v608, 256
      %v785 = vsel %vm721, %v608, 256
      %v786 = vsel %vm722, %v609, 256
      %v787 = vsel %vm723, %v609, 256
      %v788 = vsel %vm724, %v610, 256
      %v789 = vsel %vm725, %v610, 256
      %v790 = vsel %vm726, %v611, 256
      %v791 = vsel %vm727, %v611, 256
      %v792 = vsel %vm728, %v612, 256
      %v793 = vsel %vm729, %v612, 256
      %v794 = vsel %vm730, %v613, 256
      %v795 = vsel %vm731, %v613, 256
      %v796 = vsel %vm732, %v614, 256
      %v797 = vsel %vm733, %v614, 256
      %v798 = vsel %vm734, %v615, 256
      %v799 = vsel %vm735, %v615, 256
      %v800 = vsel %vm736, %v616, 256
      %v801 = vsel %vm737, %v616, 256
      %v802 = vsel %vm738, %v617, 256
      %v803 = vsel %vm739, %v617, 256
      %v804 = vsel %vm740, %v618, 256
      %v805 = vsel %vm741, %v618, 256
      %v806 = vsel %vm742, %v619, 256
      %v807 = vsel %vm743, %v619, 256
      %v808 = vsel %vm744, %v620, 256
      %v809 = vsel %vm745, %v620, 256
      %v810 = vsel %vm746, %v621, 256
      %v811 = vsel %vm747, %v621, 256
      %v812 = vsel %vm748, %v622, 256
      %v813 = vsel %vm749, %v622, 256
      %v814 = vsel %vm750, %v623, 256
      %v815 = vsel %vm751, %v623, 256
      %v816 = vsel %vm752, %v624, 256
      %v817 = vsel %vm753, %v624, 256
      %v818 = vsel %vm754, %v625, 256
      %v819 = vsel %vm755, %v625, 256
      %v820 = vsel %vm756, %v626, 256
      %v821 = vsel %vm757, %v626, 256
      %v822 = vsel %vm758, %v627, 256
      %v823 = vsel %vm759, %v627, 256
      %v824 = vsel %vm760, %v628, 256
      %v825 = vsel %vm761, %v628, 256
      %v826 = vsel %vm762, %v629, 256
      %v827 = vsel %vm763, %v629, 256
      %v828 = vsel %vm764, %v630, 256
      %v829 = vsel %vm765, %v630, 256
      %v830 = vsel %vm766, %v631, 256
      %v831 = vsel %vm767, %v631, 256
      %v832 = vsel %vm768, %v632, 256
      %v833 = vsel %vm769, %v632, 256
      %v834 = vsel %vm770, %v633, 256
      %v835 = vsel %vm771, %v633, 256
      %vm836 = vcmp.lt.s32.totalorder %v772, %v776
      %v837 = vsel %vm836, %v772, %v776
      %vm838 = vcmp.lt.s32.totalorder %v774, %v778
      %v839 = vsel %vm838, %v774, %v778
      %vm840 = vcmp.lt.s32.totalorder %v837, %v780
      %v841 = vsel %vm840, %v837, %v780
      %vm842 = vcmp.lt.s32.totalorder %v839, %v782
      %v843 = vsel %vm842, %v839, %v782
      %vm844 = vcmp.lt.s32.totalorder %v841, %v784
      %v845 = vsel %vm844, %v841, %v784
      %vm846 = vcmp.lt.s32.totalorder %v843, %v786
      %v847 = vsel %vm846, %v843, %v786
      %vm848 = vcmp.lt.s32.totalorder %v845, %v788
      %v849 = vsel %vm848, %v845, %v788
      %vm850 = vcmp.lt.s32.totalorder %v847, %v790
      %v851 = vsel %vm850, %v847, %v790
      %vm852 = vcmp.lt.s32.totalorder %v849, %v792
      %v853 = vsel %vm852, %v849, %v792
      %vm854 = vcmp.lt.s32.totalorder %v851, %v794
      %v855 = vsel %vm854, %v851, %v794
      %vm856 = vcmp.lt.s32.totalorder %v853, %v796
      %v857 = vsel %vm856, %v853, %v796
      %vm858 = vcmp.lt.s32.totalorder %v855, %v798
      %v859 = vsel %vm858, %v855, %v798
      %vm860 = vcmp.lt.s32.totalorder %v857, %v800
      %v861 = vsel %vm860, %v857, %v800
      %vm862 = vcmp.lt.s32.totalorder %v859, %v802
      %v863 = vsel %vm862, %v859, %v802
      %vm864 = vcmp.lt.s32.totalorder %v861, %v804
      %v865 = vsel %vm864, %v861, %v804
      %vm866 = vcmp.lt.s32.totalorder %v863, %v806
      %v867 = vsel %vm866, %v863, %v806
      %vm868 = vcmp.lt.s32.totalorder %v865, %v808
      %v869 = vsel %vm868, %v865, %v808
      %vm870 = vcmp.lt.s32.totalorder %v867, %v810
      %v871 = vsel %vm870, %v867, %v810
      %vm872 = vcmp.lt.s32.totalorder %v869, %v812
      %v873 = vsel %vm872, %v869, %v812
      %vm874 = vcmp.lt.s32.totalorder %v871, %v814
      %v875 = vsel %vm874, %v871, %v814
      %vm876 = vcmp.lt.s32.totalorder %v873, %v816
      %v877 = vsel %vm876, %v873, %v816
      %vm878 = vcmp.lt.s32.totalorder %v875, %v818
      %v879 = vsel %vm878, %v875, %v818
      %vm880 = vcmp.lt.s32.totalorder %v877, %v820
      %v881 = vsel %vm880, %v877, %v820
      %vm882 = vcmp.lt.s32.totalorder %v879, %v822
      %v883 = vsel %vm882, %v879, %v822
      %vm884 = vcmp.lt.s32.totalorder %v881, %v824
      %v885 = vsel %vm884, %v881, %v824
      %vm886 = vcmp.lt.s32.totalorder %v883, %v826
      %v887 = vsel %vm886, %v883, %v826
      %vm888 = vcmp.lt.s32.totalorder %v885, %v828
      %v889 = vsel %vm888, %v885, %v828
      %vm890 = vcmp.lt.s32.totalorder %v887, %v830
      %v891 = vsel %vm890, %v887, %v830
      %vm892 = vcmp.lt.s32.totalorder %v889, %v832
      %v893 = vsel %vm892, %v889, %v832
      %vm894 = vcmp.lt.s32.totalorder %v891, %v834
      %v895 = vsel %vm894, %v891, %v834
      %vm896 = vcmp.lt.s32.totalorder %v893, %v895
      %v897 = vsel %vm896, %v893, %v895
      %v898 = vrot.slane %v897, 4
      %vm899 = vcmp.lt.s32.totalorder %v897, %v898
      %v900 = vsel %vm899, %v897, %v898
      %v901 = vrot.slane %v900, 2
      %vm902 = vcmp.lt.s32.totalorder %v900, %v901
      %v903 = vsel %vm902, %v900, %v901
      %v904 = vrot.slane %v903, 1
      %vm905 = vcmp.lt.s32.totalorder %v903, %v904
      %v906 = vsel %vm905, %v903, %v904
      %vm907 = vcmp.lt.s32.totalorder %v773, %v777
      %v908 = vsel %vm907, %v773, %v777
      %vm909 = vcmp.lt.s32.totalorder %v775, %v779
      %v910 = vsel %vm909, %v775, %v779
      %vm911 = vcmp.lt.s32.totalorder %v908, %v781
      %v912 = vsel %vm911, %v908, %v781
      %vm913 = vcmp.lt.s32.totalorder %v910, %v783
      %v914 = vsel %vm913, %v910, %v783
      %vm915 = vcmp.lt.s32.totalorder %v912, %v785
      %v916 = vsel %vm915, %v912, %v785
      %vm917 = vcmp.lt.s32.totalorder %v914, %v787
      %v918 = vsel %vm917, %v914, %v787
      %vm919 = vcmp.lt.s32.totalorder %v916, %v789
      %v920 = vsel %vm919, %v916, %v789
      %vm921 = vcmp.lt.s32.totalorder %v918, %v791
      %v922 = vsel %vm921, %v918, %v791
      %vm923 = vcmp.lt.s32.totalorder %v920, %v793
      %v924 = vsel %vm923, %v920, %v793
      %vm925 = vcmp.lt.s32.totalorder %v922, %v795
      %v926 = vsel %vm925, %v922, %v795
      %vm927 = vcmp.lt.s32.totalorder %v924, %v797
      %v928 = vsel %vm927, %v924, %v797
      %vm929 = vcmp.lt.s32.totalorder %v926, %v799
      %v930 = vsel %vm929, %v926, %v799
      %vm931 = vcmp.lt.s32.totalorder %v928, %v801
      %v932 = vsel %vm931, %v928, %v801
      %vm933 = vcmp.lt.s32.totalorder %v930, %v803
      %v934 = vsel %vm933, %v930, %v803
      %vm935 = vcmp.lt.s32.totalorder %v932, %v805
      %v936 = vsel %vm935, %v932, %v805
      %vm937 = vcmp.lt.s32.totalorder %v934, %v807
      %v938 = vsel %vm937, %v934, %v807
      %vm939 = vcmp.lt.s32.totalorder %v936, %v809
      %v940 = vsel %vm939, %v936, %v809
      %vm941 = vcmp.lt.s32.totalorder %v938, %v811
      %v942 = vsel %vm941, %v938, %v811
      %vm943 = vcmp.lt.s32.totalorder %v940, %v813
      %v944 = vsel %vm943, %v940, %v813
      %vm945 = vcmp.lt.s32.totalorder %v942, %v815
      %v946 = vsel %vm945, %v942, %v815
      %vm947 = vcmp.lt.s32.totalorder %v944, %v817
      %v948 = vsel %vm947, %v944, %v817
      %vm949 = vcmp.lt.s32.totalorder %v946, %v819
      %v950 = vsel %vm949, %v946, %v819
      %vm951 = vcmp.lt.s32.totalorder %v948, %v821
      %v952 = vsel %vm951, %v948, %v821
      %vm953 = vcmp.lt.s32.totalorder %v950, %v823
      %v954 = vsel %vm953, %v950, %v823
      %vm955 = vcmp.lt.s32.totalorder %v952, %v825
      %v956 = vsel %vm955, %v952, %v825
      %vm957 = vcmp.lt.s32.totalorder %v954, %v827
      %v958 = vsel %vm957, %v954, %v827
      %vm959 = vcmp.lt.s32.totalorder %v956, %v829
      %v960 = vsel %vm959, %v956, %v829
      %vm961 = vcmp.lt.s32.totalorder %v958, %v831
      %v962 = vsel %vm961, %v958, %v831
      %vm963 = vcmp.lt.s32.totalorder %v960, %v833
      %v964 = vsel %vm963, %v960, %v833
      %vm965 = vcmp.lt.s32.totalorder %v962, %v835
      %v966 = vsel %vm965, %v962, %v835
      %vm967 = vcmp.lt.s32.totalorder %v964, %v966
      %v968 = vsel %vm967, %v964, %v966
      %v969 = vrot.slane %v968, 4
      %vm970 = vcmp.lt.s32.totalorder %v968, %v969
      %v971 = vsel %vm970, %v968, %v969
      %v972 = vrot.slane %v971, 2
      %vm973 = vcmp.lt.s32.totalorder %v971, %v972
      %v974 = vsel %vm973, %v971, %v972
      %v975 = vrot.slane %v974, 1
      %vm976 = vcmp.lt.s32.totalorder %v974, %v975
      %v977 = vsel %vm976, %v974, %v975
      %v980 = vcombine.low %v670, %v707
      %v982 = vunpack.c.l.s4 1966171168
      %v983 = vunpack.c.0.s8 %v982
      %v984 = vlaneseq
      %v985 = vshrl.u32 %v984, 7
      %v986 = vsub.s32 %v983, %v985
      %v987 = vrot.slane %v980, %v986
      %v989 = vunpack.c.l.s4 1966171168
      %v990 = vunpack.c.0.s8 %v989
      %v991 = vlaneseq
      %v992 = vshrl.u32 %v991, 7
      %v993 = vsub.s32 %v990, %v992
      %v994 = vrot.slane %v987, %v993
      %v996 = vlaneseq
      %vm997 = vcmp.ge.s32.totalorder %v996, 0
      %vm998 = vcmp.lt.s32.totalorder %v996, 256
      %vm999 = vmand %vm997, %vm998
      %1000 = vst.msk [vmem:[%s242] ss:$2 sm:$0x3] %vm999, %v994
      %v1001 = vcombine.low %v906, %v977
      %v1003 = vunpack.c.l.s4 1966171168
      %v1004 = vunpack.c.0.s8 %v1003
      %v1005 = vlaneseq
      %v1006 = vshrl.u32 %v1005, 7
      %v1007 = vsub.s32 %v1004, %v1006
      %v1008 = vrot.slane %v1001, %v1007
      %v1010 = vunpack.c.l.s4 1966171168
      %v1011 = vunpack.c.0.s8 %v1010
      %v1012 = vlaneseq
      %v1013 = vshrl.u32 %v1012, 7
      %v1014 = vsub.s32 %v1011, %v1013
      %v1015 = vrot.slane %v1008, %v1014
      %1016 = vst.msk [vmem:[%s252] ss:$2 sm:$0x3] %vm999, %v1015
      %vm1017 = vcmp.eq.s32.totalorder %v602, %v906
      %vm1018 = vcmp.eq.s32.totalorder %v602, %v977
      %vm1019 = vcmp.eq.s32.totalorder %v603, %v906
      %vm1020 = vcmp.eq.s32.totalorder %v603, %v977
      %vm1021 = vcmp.eq.s32.totalorder %v604, %v906
      %vm1022 = vcmp.eq.s32.totalorder %v604, %v977
      %vm1023 = vcmp.eq.s32.totalorder %v605, %v906
      %vm1024 = vcmp.eq.s32.totalorder %v605, %v977
      %vm1025 = vcmp.eq.s32.totalorder %v606, %v906
      %vm1026 = vcmp.eq.s32.totalorder %v606, %v977
      %vm1027 = vcmp.eq.s32.totalorder %v607, %v906
      %vm1028 = vcmp.eq.s32.totalorder %v607, %v977
      %vm1029 = vcmp.eq.s32.totalorder %v608, %v906
      %vm1030 = vcmp.eq.s32.totalorder %v608, %v977
      %vm1031 = vcmp.eq.s32.totalorder %v609, %v906
      %vm1032 = vcmp.eq.s32.totalorder %v609, %v977
      %vm1033 = vcmp.eq.s32.totalorder %v610, %v906
      %vm1034 = vcmp.eq.s32.totalorder %v610, %v977
      %vm1035 = vcmp.eq.s32.totalorder %v611, %v906
      %vm1036 = vcmp.eq.s32.totalorder %v611, %v977
      %vm1037 = vcmp.eq.s32.totalorder %v612, %v906
      %vm1038 = vcmp.eq.s32.totalorder %v612, %v977
      %vm1039 = vcmp.eq.s32.totalorder %v613, %v906
      %vm1040 = vcmp.eq.s32.totalorder %v613, %v977
      %vm1041 = vcmp.eq.s32.totalorder %v614, %v906
      %vm1042 = vcmp.eq.s32.totalorder %v614, %v977
      %vm1043 = vcmp.eq.s32.totalorder %v615, %v906
      %vm1044 = vcmp.eq.s32.totalorder %v615, %v977
      %vm1045 = vcmp.eq.s32.totalorder %v616, %v906
      %vm1046 = vcmp.eq.s32.totalorder %v616, %v977
      %vm1047 = vcmp.eq.s32.totalorder %v617, %v906
      %vm1048 = vcmp.eq.s32.totalorder %v617, %v977
      %vm1049 = vcmp.eq.s32.totalorder %v618, %v906
      %vm1050 = vcmp.eq.s32.totalorder %v618, %v977
      %vm1051 = vcmp.eq.s32.totalorder %v619, %v906
      %vm1052 = vcmp.eq.s32.totalorder %v619, %v977
      %vm1053 = vcmp.eq.s32.totalorder %v620, %v906
      %vm1054 = vcmp.eq.s32.totalorder %v620, %v977
      %vm1055 = vcmp.eq.s32.totalorder %v621, %v906
      %vm1056 = vcmp.eq.s32.totalorder %v621, %v977
      %vm1057 = vcmp.eq.s32.totalorder %v622, %v906
      %vm1058 = vcmp.eq.s32.totalorder %v622, %v977
      %vm1059 = vcmp.eq.s32.totalorder %v623, %v906
      %vm1060 = vcmp.eq.s32.totalorder %v623, %v977
      %vm1061 = vcmp.eq.s32.totalorder %v624, %v906
      %vm1062 = vcmp.eq.s32.totalorder %v624, %v977
      %vm1063 = vcmp.eq.s32.totalorder %v625, %v906
      %vm1064 = vcmp.eq.s32.totalorder %v625, %v977
      %vm1065 = vcmp.eq.s32.totalorder %v626, %v906
      %vm1066 = vcmp.eq.s32.totalorder %v626, %v977
      %vm1067 = vcmp.eq.s32.totalorder %v627, %v906
      %vm1068 = vcmp.eq.s32.totalorder %v627, %v977
      %vm1069 = vcmp.eq.s32.totalorder %v628, %v906
      %vm1070 = vcmp.eq.s32.totalorder %v628, %v977
      %vm1071 = vcmp.eq.s32.totalorder %v629, %v906
      %vm1072 = vcmp.eq.s32.totalorder %v629, %v977
      %vm1073 = vcmp.eq.s32.totalorder %v630, %v906
      %vm1074 = vcmp.eq.s32.totalorder %v630, %v977
      %vm1075 = vcmp.eq.s32.totalorder %v631, %v906
      %vm1076 = vcmp.eq.s32.totalorder %v631, %v977
      %vm1077 = vcmp.eq.s32.totalorder %v632, %v906
      %vm1078 = vcmp.eq.s32.totalorder %v632, %v977
      %vm1079 = vcmp.eq.s32.totalorder %v633, %v906
      %vm1080 = vcmp.eq.s32.totalorder %v633, %v977
      %v1081 = vsel %vm1017, -inf, %v443
      %v1082 = vsel %vm1018, -inf, %v445
      %v1083 = vsel %vm1019, -inf, %v447
      %v1084 = vsel %vm1020, -inf, %v449
      %v1085 = vsel %vm1021, -inf, %v453
      %v1086 = vsel %vm1022, -inf, %v455
      %v1087 = vsel %vm1023, -inf, %v457
      %v1088 = vsel %vm1024, -inf, %v459
      %v1089 = vsel %vm1025, -inf, %v463
      %v1090 = vsel %vm1026, -inf, %v465
      %v1091 = vsel %vm1027, -inf, %v467
      %v1092 = vsel %vm1028, -inf, %v469
      %v1093 = vsel %vm1029, -inf, %v473
      %v1094 = vsel %vm1030, -inf, %v475
      %v1095 = vsel %vm1031, -inf, %v477
      %v1096 = vsel %vm1032, -inf, %v479
      %v1097 = vsel %vm1033, -inf, %v483
      %v1098 = vsel %vm1034, -inf, %v485
      %v1099 = vsel %vm1035, -inf, %v487
      %v1100 = vsel %vm1036, -inf, %v489
      %v1101 = vsel %vm1037, -inf, %v493
      %v1102 = vsel %vm1038, -inf, %v495
      %v1103 = vsel %vm1039, -inf, %v497
      %v1104 = vsel %vm1040, -inf, %v499
      %v1105 = vsel %vm1041, -inf, %v503
      %v1106 = vsel %vm1042, -inf, %v505
      %v1107 = vsel %vm1043, -inf, %v507
      %v1108 = vsel %vm1044, -inf, %v509
      %v1109 = vsel %vm1045, -inf, %v513
      %v1110 = vsel %vm1046, -inf, %v515
      %v1111 = vsel %vm1047, -inf, %v517
      %v1112 = vsel %vm1048, -inf, %v519
      %v1113 = vsel %vm1049, -inf, %v523
      %v1114 = vsel %vm1050, -inf, %v525
      %v1115 = vsel %vm1051, -inf, %v527
      %v1116 = vsel %vm1052, -inf, %v529
      %v1117 = vsel %vm1053, -inf, %v533
      %v1118 = vsel %vm1054, -inf, %v535
      %v1119 = vsel %vm1055, -inf, %v537
      %v1120 = vsel %vm1056, -inf, %v539
      %v1121 = vsel %vm1057, -inf, %v543
      %v1122 = vsel %vm1058, -inf, %v545
      %v1123 = vsel %vm1059, -inf, %v547
      %v1124 = vsel %vm1060, -inf, %v549
      %v1125 = vsel %vm1061, -inf, %v553
      %v1126 = vsel %vm1062, -inf, %v555
      %v1127 = vsel %vm1063, -inf, %v557
      %v1128 = vsel %vm1064, -inf, %v559
      %v1129 = vsel %vm1065, -inf, %v563
      %v1130 = vsel %vm1066, -inf, %v565
      %v1131 = vsel %vm1067, -inf, %v567
      %v1132 = vsel %vm1068, -inf, %v569
      %v1133 = vsel %vm1069, -inf, %v573
      %v1134 = vsel %vm1070, -inf, %v575
      %v1135 = vsel %vm1071, -inf, %v577
      %v1136 = vsel %vm1072, -inf, %v579
      %v1137 = vsel %vm1073, -inf, %v583
      %v1138 = vsel %vm1074, -inf, %v585
      %v1139 = vsel %vm1075, -inf, %v587
      %v1140 = vsel %vm1076, -inf, %v589
      %v1141 = vsel %vm1077, -inf, %v593
      %v1142 = vsel %vm1078, -inf, %v595
      %v1143 = vsel %vm1079, -inf, %v597
      %v1144 = vsel %vm1080, -inf, %v599
      %v1145 = vmax.f32 %v1081, %v1085
      %v1146 = vmax.f32 %v1083, %v1087
      %v1147 = vmax.f32 %v1145, %v1089
      %v1148 = vmax.f32 %v1146, %v1091
      %v1149 = vmax.f32 %v1147, %v1093
      %v1150 = vmax.f32 %v1148, %v1095
      %v1151 = vmax.f32 %v1149, %v1097
      %v1152 = vmax.f32 %v1150, %v1099
      %v1153 = vmax.f32 %v1151, %v1101
      %v1154 = vmax.f32 %v1152, %v1103
      %v1155 = vmax.f32 %v1153, %v1105
      %v1156 = vmax.f32 %v1154, %v1107
      %v1157 = vmax.f32 %v1155, %v1109
      %v1158 = vmax.f32 %v1156, %v1111
      %v1159 = vmax.f32 %v1157, %v1113
      %v1160 = vmax.f32 %v1158, %v1115
      %v1161 = vmax.f32 %v1159, %v1117
      %v1162 = vmax.f32 %v1160, %v1119
      %v1163 = vmax.f32 %v1161, %v1121
      %v1164 = vmax.f32 %v1162, %v1123
      %v1165 = vmax.f32 %v1163, %v1125
      %v1166 = vmax.f32 %v1164, %v1127
      %v1167 = vmax.f32 %v1165, %v1129
      %v1168 = vmax.f32 %v1166, %v1131
      %v1169 = vmax.f32 %v1167, %v1133
      %v1170 = vmax.f32 %v1168, %v1135
      %v1171 = vmax.f32 %v1169, %v1137
      %v1172 = vmax.f32 %v1170, %v1139
      %v1173 = vmax.f32 %v1171, %v1141
      %v1174 = vmax.f32 %v1172, %v1143
      %v1175 = vmax.f32 %v1173, %v1174
      %v1176 = vrot.slane %v1175, 4
      %v1177 = vmax.f32 %v1175, %v1176
      %v1178 = vrot.slane %v1177, 2
      %v1179 = vmax.f32 %v1177, %v1178
      %v1180 = vrot.slane %v1179, 1
      %v1181 = vmax.f32 %v1179, %v1180
      %v1182 = vmax.f32 %v1082, %v1086
      %v1183 = vmax.f32 %v1084, %v1088
      %v1184 = vmax.f32 %v1182, %v1090
      %v1185 = vmax.f32 %v1183, %v1092
      %v1186 = vmax.f32 %v1184, %v1094
      %v1187 = vmax.f32 %v1185, %v1096
      %v1188 = vmax.f32 %v1186, %v1098
      %v1189 = vmax.f32 %v1187, %v1100
      %v1190 = vmax.f32 %v1188, %v1102
      %v1191 = vmax.f32 %v1189, %v1104
      %v1192 = vmax.f32 %v1190, %v1106
      %v1193 = vmax.f32 %v1191, %v1108
      %v1194 = vmax.f32 %v1192, %v1110
      %v1195 = vmax.f32 %v1193, %v1112
      %v1196 = vmax.f32 %v1194, %v1114
      %v1197 = vmax.f32 %v1195, %v1116
      %v1198 = vmax.f32 %v1196, %v1118
      %v1199 = vmax.f32 %v1197, %v1120
      %v1200 = vmax.f32 %v1198, %v1122
      %v1201 = vmax.f32 %v1199, %v1124
      %v1202 = vmax.f32 %v1200, %v1126
      %v1203 = vmax.f32 %v1201, %v1128
      %v1204 = vmax.f32 %v1202, %v1130
      %v1205 = vmax.f32 %v1203, %v1132
      %v1206 = vmax.f32 %v1204, %v1134
      %v1207 = vmax.f32 %v1205, %v1136
      %v1208 = vmax.f32 %v1206, %v1138
      %v1209 = vmax.f32 %v1207, %v1140
      %v1210 = vmax.f32 %v1208, %v1142
      %v1211 = vmax.f32 %v1209, %v1144
      %v1212 = vmax.f32 %v1210, %v1211
      %v1213 = vrot.slane %v1212, 4
      %v1214 = vmax.f32 %v1212, %v1213
      %v1215 = vrot.slane %v1214, 2
      %v1216 = vmax.f32 %v1214, %v1215
      %v1217 = vrot.slane %v1216, 1
      %v1218 = vmax.f32 %v1216, %v1217
      %vm1219 = vcmp.eq.f32.partialorder %v1081, %v1181
      %vm1220 = vcmp.eq.f32.partialorder %v1082, %v1218
      %vm1221 = vcmp.eq.f32.partialorder %v1083, %v1181
      %vm1222 = vcmp.eq.f32.partialorder %v1084, %v1218
      %vm1223 = vcmp.eq.f32.partialorder %v1085, %v1181
      %vm1224 = vcmp.eq.f32.partialorder %v1086, %v1218
      %vm1225 = vcmp.eq.f32.partialorder %v1087, %v1181
      %vm1226 = vcmp.eq.f32.partialorder %v1088, %v1218
      %vm1227 = vcmp.eq.f32.partialorder %v1089, %v1181
      %vm1228 = vcmp.eq.f32.partialorder %v1090, %v1218
      %vm1229 = vcmp.eq.f32.partialorder %v1091, %v1181
      %vm1230 = vcmp.eq.f32.partialorder %v1092, %v1218
      %vm1231 = vcmp.eq.f32.partialorder %v1093, %v1181
      %vm1232 = vcmp.eq.f32.partialorder %v1094, %v1218
      %vm1233 = vcmp.eq.f32.partialorder %v1095, %v1181
      %vm1234 = vcmp.eq.f32.partialorder %v1096, %v1218
      %vm1235 = vcmp.eq.f32.partialorder %v1097, %v1181
      %vm1236 = vcmp.eq.f32.partialorder %v1098, %v1218
      %vm1237 = vcmp.eq.f32.partialorder %v1099, %v1181
      %vm1238 = vcmp.eq.f32.partialorder %v1100, %v1218
      %vm1239 = vcmp.eq.f32.partialorder %v1101, %v1181
      %vm1240 = vcmp.eq.f32.partialorder %v1102, %v1218
      %vm1241 = vcmp.eq.f32.partialorder %v1103, %v1181
      %vm1242 = vcmp.eq.f32.partialorder %v1104, %v1218
      %vm1243 = vcmp.eq.f32.partialorder %v1105, %v1181
      %vm1244 = vcmp.eq.f32.partialorder %v1106, %v1218
      %vm1245 = vcmp.eq.f32.partialorder %v1107, %v1181
      %vm1246 = vcmp.eq.f32.partialorder %v1108, %v1218
      %vm1247 = vcmp.eq.f32.partialorder %v1109, %v1181
      %vm1248 = vcmp.eq.f32.partialorder %v1110, %v1218
      %vm1249 = vcmp.eq.f32.partialorder %v1111, %v1181
      %vm1250 = vcmp.eq.f32.partialorder %v1112, %v1218
      %vm1251 = vcmp.eq.f32.partialorder %v1113, %v1181
      %vm1252 = vcmp.eq.f32.partialorder %v1114, %v1218
      %vm1253 = vcmp.eq.f32.partialorder %v1115, %v1181
      %vm1254 = vcmp.eq.f32.partialorder %v1116, %v1218
      %vm1255 = vcmp.eq.f32.partialorder %v1117, %v1181
      %vm1256 = vcmp.eq.f32.partialorder %v1118, %v1218
      %vm1257 = vcmp.eq.f32.partialorder %v1119, %v1181
      %vm1258 = vcmp.eq.f32.partialorder %v1120, %v1218
      %vm1259 = vcmp.eq.f32.partialorder %v1121, %v1181
      %vm1260 = vcmp.eq.f32.partialorder %v1122, %v1218
      %vm1261 = vcmp.eq.f32.partialorder %v1123, %v1181
      %vm1262 = vcmp.eq.f32.partialorder %v1124, %v1218
      %vm1263 = vcmp.eq.f32.partialorder %v1125, %v1181
      %vm1264 = vcmp.eq.f32.partialorder %v1126, %v1218
      %vm1265 = vcmp.eq.f32.partialorder %v1127, %v1181
      %vm1266 = vcmp.eq.f32.partialorder %v1128, %v1218
      %vm1267 = vcmp.eq.f32.partialorder %v1129, %v1181
      %vm1268 = vcmp.eq.f32.partialorder %v1130, %v1218
      %vm1269 = vcmp.eq.f32.partialorder %v1131, %v1181
      %vm1270 = vcmp.eq.f32.partialorder %v1132, %v1218
      %vm1271 = vcmp.eq.f32.partialorder %v1133, %v1181
      %vm1272 = vcmp.eq.f32.partialorder %v1134, %v1218
      %vm1273 = vcmp.eq.f32.partialorder %v1135, %v1181
      %vm1274 = vcmp.eq.f32.partialorder %v1136, %v1218
      %vm1275 = vcmp.eq.f32.partialorder %v1137, %v1181
      %vm1276 = vcmp.eq.f32.partialorder %v1138, %v1218
      %vm1277 = vcmp.eq.f32.partialorder %v1139, %v1181
      %vm1278 = vcmp.eq.f32.partialorder %v1140, %v1218
      %vm1279 = vcmp.eq.f32.partialorder %v1141, %v1181
      %vm1280 = vcmp.eq.f32.partialorder %v1142, %v1218
      %vm1281 = vcmp.eq.f32.partialorder %v1143, %v1181
      %vm1282 = vcmp.eq.f32.partialorder %v1144, %v1218
      %v1283 = vsel %vm1219, %v602, 256
      %v1284 = vsel %vm1220, %v602, 256
      %v1285 = vsel %vm1221, %v603, 256
      %v1286 = vsel %vm1222, %v603, 256
      %v1287 = vsel %vm1223, %v604, 256
      %v1288 = vsel %vm1224, %v604, 256
      %v1289 = vsel %vm1225, %v605, 256
      %v1290 = vsel %vm1226, %v605, 256
      %v1291 = vsel %vm1227, %v606, 256
      %v1292 = vsel %vm1228, %v606, 256
      %v1293 = vsel %vm1229, %v607, 256
      %v1294 = vsel %vm1230, %v607, 256
      %v1295 = vsel %vm1231, %v608, 256
      %v1296 = vsel %vm1232, %v608, 256
      %v1297 = vsel %vm1233, %v609, 256
      %v1298 = vsel %vm1234, %v609, 256
      %v1299 = vsel %vm1235, %v610, 256
      %v1300 = vsel %vm1236, %v610, 256
      %v1301 = vsel %vm1237, %v611, 256
      %v1302 = vsel %vm1238, %v611, 256
      %v1303 = vsel %vm1239, %v612, 256
      %v1304 = vsel %vm1240, %v612, 256
      %v1305 = vsel %vm1241, %v613, 256
      %v1306 = vsel %vm1242, %v613, 256
      %v1307 = vsel %vm1243, %v614, 256
      %v1308 = vsel %vm1244, %v614, 256
      %v1309 = vsel %vm1245, %v615, 256
      %v1310 = vsel %vm1246, %v615, 256
      %v1311 = vsel %vm1247, %v616, 256
      %v1312 = vsel %vm1248, %v616, 256
      %v1313 = vsel %vm1249, %v617, 256
      %v1314 = vsel %vm1250, %v617, 256
      %v1315 = vsel %vm1251, %v618, 256
      %v1316 = vsel %vm1252, %v618, 256
      %v1317 = vsel %vm1253, %v619, 256
      %v1318 = vsel %vm1254, %v619, 256
      %v1319 = vsel %vm1255, %v620, 256
      %v1320 = vsel %vm1256, %v620, 256
      %v1321 = vsel %vm1257, %v621, 256
      %v1322 = vsel %vm1258, %v621, 256
      %v1323 = vsel %vm1259, %v622, 256
      %v1324 = vsel %vm1260, %v622, 256
      %v1325 = vsel %vm1261, %v623, 256
      %v1326 = vsel %vm1262, %v623, 256
      %v1327 = vsel %vm1263, %v624, 256
      %v1328 = vsel %vm1264, %v624, 256
      %v1329 = vsel %vm1265, %v625, 256
      %v1330 = vsel %vm1266, %v625, 256
      %v1331 = vsel %vm1267, %v626, 256
      %v1332 = vsel %vm1268, %v626, 256
      %v1333 = vsel %vm1269, %v627, 256
      %v1334 = vsel %vm1270, %v627, 256
      %v1335 = vsel %vm1271, %v628, 256
      %v1336 = vsel %vm1272, %v628, 256
      %v1337 = vsel %vm1273, %v629, 256
      %v1338 = vsel %vm1274, %v629, 256
      %v1339 = vsel %vm1275, %v630, 256
      %v1340 = vsel %vm1276, %v630, 256
      %v1341 = vsel %vm1277, %v631, 256
      %v1342 = vsel %vm1278, %v631, 256
      %v1343 = vsel %vm1279, %v632, 256
      %v1344 = vsel %vm1280, %v632, 256
      %v1345 = vsel %vm1281, %v633, 256
      %v1346 = vsel %vm1282, %v633, 256
      %vm1347 = vcmp.lt.s32.totalorder %v1283, %v1287
      %v1348 = vsel %vm1347, %v1283, %v1287
      %vm1349 = vcmp.lt.s32.totalorder %v1285, %v1289
      %v1350 = vsel %vm1349, %v1285, %v1289
      %vm1351 = vcmp.lt.s32.totalorder %v1348, %v1291
      %v1352 = vsel %vm1351, %v1348, %v1291
      %vm1353 = vcmp.lt.s32.totalorder %v1350, %v1293
      %v1354 = vsel %vm1353, %v1350, %v1293
      %vm1355 = vcmp.lt.s32.totalorder %v1352, %v1295
      %v1356 = vsel %vm1355, %v1352, %v1295
      %vm1357 = vcmp.lt.s32.totalorder %v1354, %v1297
      %v1358 = vsel %vm1357, %v1354, %v1297
      %vm1359 = vcmp.lt.s32.totalorder %v1356, %v1299
      %v1360 = vsel %vm1359, %v1356, %v1299
      %vm1361 = vcmp.lt.s32.totalorder %v1358, %v1301
      %v1362 = vsel %vm1361, %v1358, %v1301
      %vm1363 = vcmp.lt.s32.totalorder %v1360, %v1303
      %v1364 = vsel %vm1363, %v1360, %v1303
      %vm1365 = vcmp.lt.s32.totalorder %v1362, %v1305
      %v1366 = vsel %vm1365, %v1362, %v1305
      %vm1367 = vcmp.lt.s32.totalorder %v1364, %v1307
      %v1368 = vsel %vm1367, %v1364, %v1307
      %vm1369 = vcmp.lt.s32.totalorder %v1366, %v1309
      %v1370 = vsel %vm1369, %v1366, %v1309
      %vm1371 = vcmp.lt.s32.totalorder %v1368, %v1311
      %v1372 = vsel %vm1371, %v1368, %v1311
      %vm1373 = vcmp.lt.s32.totalorder %v1370, %v1313
      %v1374 = vsel %vm1373, %v1370, %v1313
      %vm1375 = vcmp.lt.s32.totalorder %v1372, %v1315
      %v1376 = vsel %vm1375, %v1372, %v1315
      %vm1377 = vcmp.lt.s32.totalorder %v1374, %v1317
      %v1378 = vsel %vm1377, %v1374, %v1317
      %vm1379 = vcmp.lt.s32.totalorder %v1376, %v1319
      %v1380 = vsel %vm1379, %v1376, %v1319
      %vm1381 = vcmp.lt.s32.totalorder %v1378, %v1321
      %v1382 = vsel %vm1381, %v1378, %v1321
      %vm1383 = vcmp.lt.s32.totalorder %v1380, %v1323
      %v1384 = vsel %vm1383, %v1380, %v1323
      %vm1385 = vcmp.lt.s32.totalorder %v1382, %v1325
      %v1386 = vsel %vm1385, %v1382, %v1325
      %vm1387 = vcmp.lt.s32.totalorder %v1384, %v1327
      %v1388 = vsel %vm1387, %v1384, %v1327
      %vm1389 = vcmp.lt.s32.totalorder %v1386, %v1329
      %v1390 = vsel %vm1389, %v1386, %v1329
      %vm1391 = vcmp.lt.s32.totalorder %v1388, %v1331
      %v1392 = vsel %vm1391, %v1388, %v1331
      %vm1393 = vcmp.lt.s32.totalorder %v1390, %v1333
      %v1394 = vsel %vm1393, %v1390, %v1333
      %vm1395 = vcmp.lt.s32.totalorder %v1392, %v1335
      %v1396 = vsel %vm1395, %v1392, %v1335
      %vm1397 = vcmp.lt.s32.totalorder %v1394, %v1337
      %v1398 = vsel %vm1397, %v1394, %v1337
      %vm1399 = vcmp.lt.s32.totalorder %v1396, %v1339
      %v1400 = vsel %vm1399, %v1396, %v1339
      %vm1401 = vcmp.lt.s32.totalorder %v1398, %v1341
      %v1402 = vsel %vm1401, %v1398, %v1341
      %vm1403 = vcmp.lt.s32.totalorder %v1400, %v1343
      %v1404 = vsel %vm1403, %v1400, %v1343
      %vm1405 = vcmp.lt.s32.totalorder %v1402, %v1345
      %v1406 = vsel %vm1405, %v1402, %v1345
      %vm1407 = vcmp.lt.s32.totalorder %v1404, %v1406
      %v1408 = vsel %vm1407, %v1404, %v1406
      %v1409 = vrot.slane %v1408, 4
      %vm1410 = vcmp.lt.s32.totalorder %v1408, %v1409
      %v1411 = vsel %vm1410, %v1408, %v1409
      %v1412 = vrot.slane %v1411, 2
      %vm1413 = vcmp.lt.s32.totalorder %v1411, %v1412
      %v1414 = vsel %vm1413, %v1411, %v1412
      %v1415 = vrot.slane %v1414, 1
      %vm1416 = vcmp.lt.s32.totalorder %v1414, %v1415
      %v1417 = vsel %vm1416, %v1414, %v1415
      %vm1418 = vcmp.lt.s32.totalorder %v1284, %v1288
      %v1419 = vsel %vm1418, %v1284, %v1288
      %vm1420 = vcmp.lt.s32.totalorder %v1286, %v1290
      %v1421 = vsel %vm1420, %v1286, %v1290
      %vm1422 = vcmp.lt.s32.totalorder %v1419, %v1292
      %v1423 = vsel %vm1422, %v1419, %v1292
      %vm1424 = vcmp.lt.s32.totalorder %v1421, %v1294
      %v1425 = vsel %vm1424, %v1421, %v1294
      %vm1426 = vcmp.lt.s32.totalorder %v1423, %v1296
      %v1427 = vsel %vm1426, %v1423, %v1296
      %vm1428 = vcmp.lt.s32.totalorder %v1425, %v1298
      %v1429 = vsel %vm1428, %v1425, %v1298
      %vm1430 = vcmp.lt.s32.totalorder %v1427, %v1300
      %v1431 = vsel %vm1430, %v1427, %v1300
      %vm1432 = vcmp.lt.s32.totalorder %v1429, %v1302
      %v1433 = vsel %vm1432, %v1429, %v1302
      %vm1434 = vcmp.lt.s32.totalorder %v1431, %v1304
      %v1435 = vsel %vm1434, %v1431, %v1304
      %vm1436 = vcmp.lt.s32.totalorder %v1433, %v1306
      %v1437 = vsel %vm1436, %v1433, %v1306
      %vm1438 = vcmp.lt.s32.totalorder %v1435, %v1308
      %v1439 = vsel %vm1438, %v1435, %v1308
      %vm1440 = vcmp.lt.s32.totalorder %v1437, %v1310
      %v1441 = vsel %vm1440, %v1437, %v1310
      %vm1442 = vcmp.lt.s32.totalorder %v1439, %v1312
      %v1443 = vsel %vm1442, %v1439, %v1312
      %vm1444 = vcmp.lt.s32.totalorder %v1441, %v1314
      %v1445 = vsel %vm1444, %v1441, %v1314
      %vm1446 = vcmp.lt.s32.totalorder %v1443, %v1316
      %v1447 = vsel %vm1446, %v1443, %v1316
      %vm1448 = vcmp.lt.s32.totalorder %v1445, %v1318
      %v1449 = vsel %vm1448, %v1445, %v1318
      %vm1450 = vcmp.lt.s32.totalorder %v1447, %v1320
      %v1451 = vsel %vm1450, %v1447, %v1320
      %vm1452 = vcmp.lt.s32.totalorder %v1449, %v1322
      %v1453 = vsel %vm1452, %v1449, %v1322
      %vm1454 = vcmp.lt.s32.totalorder %v1451, %v1324
      %v1455 = vsel %vm1454, %v1451, %v1324
      %vm1456 = vcmp.lt.s32.totalorder %v1453, %v1326
      %v1457 = vsel %vm1456, %v1453, %v1326
      %vm1458 = vcmp.lt.s32.totalorder %v1455, %v1328
      %v1459 = vsel %vm1458, %v1455, %v1328
      %vm1460 = vcmp.lt.s32.totalorder %v1457, %v1330
      %v1461 = vsel %vm1460, %v1457, %v1330
      %vm1462 = vcmp.lt.s32.totalorder %v1459, %v1332
      %v1463 = vsel %vm1462, %v1459, %v1332
      %vm1464 = vcmp.lt.s32.totalorder %v1461, %v1334
      %v1465 = vsel %vm1464, %v1461, %v1334
      %vm1466 = vcmp.lt.s32.totalorder %v1463, %v1336
      %v1467 = vsel %vm1466, %v1463, %v1336
      %vm1468 = vcmp.lt.s32.totalorder %v1465, %v1338
      %v1469 = vsel %vm1468, %v1465, %v1338
      %vm1470 = vcmp.lt.s32.totalorder %v1467, %v1340
      %v1471 = vsel %vm1470, %v1467, %v1340
      %vm1472 = vcmp.lt.s32.totalorder %v1469, %v1342
      %v1473 = vsel %vm1472, %v1469, %v1342
      %vm1474 = vcmp.lt.s32.totalorder %v1471, %v1344
      %v1475 = vsel %vm1474, %v1471, %v1344
      %vm1476 = vcmp.lt.s32.totalorder %v1473, %v1346
      %v1477 = vsel %vm1476, %v1473, %v1346
      %vm1478 = vcmp.lt.s32.totalorder %v1475, %v1477
      %v1479 = vsel %vm1478, %v1475, %v1477
      %v1480 = vrot.slane %v1479, 4
      %vm1481 = vcmp.lt.s32.totalorder %v1479, %v1480
      %v1482 = vsel %vm1481, %v1479, %v1480
      %v1483 = vrot.slane %v1482, 2
      %vm1484 = vcmp.lt.s32.totalorder %v1482, %v1483
      %v1485 = vsel %vm1484, %v1482, %v1483
      %v1486 = vrot.slane %v1485, 1
      %vm1487 = vcmp.lt.s32.totalorder %v1485, %v1486
      %v1488 = vsel %vm1487, %v1485, %v1486
      %v1491 = vcombine.low %v1181, %v1218
      %v1493 = vunpack.c.l.s4 1966171168
      %v1494 = vunpack.c.0.s8 %v1493
      %v1495 = vlaneseq
      %v1496 = vshrl.u32 %v1495, 7
      %v1497 = vsub.s32 %v1494, %v1496
      %v1498 = vrot.slane %v1491, %v1497
      %v1500 = vunpack.c.l.s4 1966171168
      %v1501 = vunpack.c.0.s8 %v1500
      %v1502 = vlaneseq
      %v1503 = vshrl.u32 %v1502, 7
      %v1504 = vsub.s32 %v1501, %v1503
      %v1505 = vrot.slane %v1498, %v1504
      %s1507 = scalar_lea.vmem %s242, 1
      %1508 = vst.msk [vmem:[%s1507] ss:$2 sm:$0x3] %vm999, %v1505
      %v1509 = vcombine.low %v1417, %v1488
      %v1511 = vunpack.c.l.s4 1966171168
      %v1512 = vunpack.c.0.s8 %v1511
      %v1513 = vlaneseq
      %v1514 = vshrl.u32 %v1513, 7
      %v1515 = vsub.s32 %v1512, %v1514
      %v1516 = vrot.slane %v1509, %v1515
      %v1518 = vunpack.c.l.s4 1966171168
      %v1519 = vunpack.c.0.s8 %v1518
      %v1520 = vlaneseq
      %v1521 = vshrl.u32 %v1520, 7
      %v1522 = vsub.s32 %v1519, %v1521
      %v1523 = vrot.slane %v1516, %v1522
      %s1524 = scalar_lea.vmem %s252, 1
      %1525 = vst.msk [vmem:[%s1524] ss:$2 sm:$0x3] %vm999, %v1523
      %s1526 = smul.u32 2, %s20
      %p1527 = scmp.lt.s32.totalorder %s19, 1
      %s1528 = scalar_select %p1527, %s19, 1
      %p1529 = scmp.lt.s32.totalorder %s1526, 1
      %s1530 = scalar_select %p1529, %s1526, 1
      %s1531 = smul.addr %s1528, 2
      %s1532 = sadd.s32 %s1530, %s1531
      %s1533 = smul.addr %s1532, 2
      %s1534 = scalar_lea.vmem %s2, %s1533
      %s1535 = smul.u32 2, %s20
      %p1536 = scmp.lt.s32.totalorder %s19, 1
      %s1537 = scalar_select %p1536, %s19, 1
      %p1538 = scmp.lt.s32.totalorder %s1535, 1
      %s1539 = scalar_select %p1538, %s1535, 1
      %s1540 = smul.addr %s1537, 2
      %s1541 = sadd.s32 %s1539, %s1540
      %s1542 = smul.addr %s1541, 2
      %s1543 = scalar_lea.vmem %s3, %s1542
      // Predicated region
      $region29: #{run.3} parent=27 // pred_check
        %p1544 = pneg %p101
      $region30: #{run.3} parent=27 // pred_check_branch
        %1546 = sbr.rel (%p1544) target = $region32
      $region31: #{run.3} parent=27 // pred_region
        %s1547 = smul.u32 2, %s20
      $region32: #{run.3} parent=27 // pred_fallthru
        _
      // Predicated region
      $region33: #{run.3} parent=27 // pred_check
        %p1548 = pneg %p129
      $region34: #{run.3} parent=27 // pred_check_branch
        %1550 = sbr.rel (%p1548) target = $region36
      $region35: #{run.3} parent=27 // pred_region
        %s1551 = smul.u32 2, %s20
      $region36: #{run.3} parent=27 // pred_fallthru
        _
    $region28: #{run.3} parent=5 // pred_fallthru
      _
    %p1552 = scmp.le.s32.totalorder 2, %s10
    // Predicated region
    $region37: #{run.3} parent=5 // pred_check
      %p1553 = pneg %p1552
    $region38: #{run.3} parent=5 // pred_check_branch
      %1555 = sbr.rel (%p1553) target = $region40
    $region39: #{run.3} parent=5 // pred_region
      %s1556 = ssub.s32 %s10, 2
      // Predicated region
      $region41: #{run.3} parent=39 // pred_check
        %p1557 = pneg %p107
      $region42: #{run.3} parent=39 // pred_check_branch
        %1559 = sbr.rel (%p1557) target = $region44
      $region43: #{run.3} parent=39 // pred_region
        %s1560 = smul.u32 2, %s22
        %p1561 = scmp.lt.s32.totalorder %s21, 1
        %s1562 = scalar_select %p1561, %s21, 1
        %p1563 = scmp.lt.s32.totalorder %s1560, 1
        %s1564 = scalar_select %p1563, %s1560, 1
        %s1565 = smul.addr %s1562, 2
        %s1566 = sadd.s32 %s1564, %s1565
        %s1567 = smul.addr %s1566, 2
        %s1568 = scalar_lea.vmem %s2, %s1567
      $region44: #{run.3} parent=39 // pred_fallthru
        _
      // Predicated region
      $region45: #{run.3} parent=39 // pred_check
        %p1569 = pneg %p135
      $region46: #{run.3} parent=39 // pred_check_branch
        %1571 = sbr.rel (%p1569) target = $region48
      $region47: #{run.3} parent=39 // pred_region
        %s1572 = smul.u32 2, %s22
        %p1573 = scmp.lt.s32.totalorder %s21, 1
        %s1574 = scalar_select %p1573, %s21, 1
        %p1575 = scmp.lt.s32.totalorder %s1572, 1
        %s1576 = scalar_select %p1575, %s1572, 1
        %s1577 = smul.addr %s1574, 2
        %s1578 = sadd.s32 %s1576, %s1577
        %s1579 = smul.addr %s1578, 2
        %s1580 = scalar_lea.vmem %s3, %s1579
      $region48: #{run.3} parent=39 // pred_fallthru
        _
    $region40: #{run.3} parent=5 // pred_fallthru
      _
  $region6: #{run.3} parent=0 // loop_footer
    %s14 = sadd.s32 1, %s10
  $region7: #{run.3} parent=0 // loop_footer_branch
    %9 = sbr.rel target = $region3
  $region8: #{run.3} parent=0 // loop_exit
    _

// kernel: squeeze.569
$region0: #{squeeze.569}
  %s0 = inlined_call_operand.vmem [shape: f32[2,256], index: 0, kind: input, shape index: {}]
  %s1 = inlined_call_operand.hbm [shape: f32[2,1,16,16], index: 1, kind: output, shape index: {}]
  $region1: #{squeeze.569} parent=0
    #allocation0 [shape = 'u8[16384]{0}', space=vmem, size = 0x4000, scoped, tag = 'operand span for operand 1']
    #allocation1 [shape = 's32[1]{0}', space=sflag, size = 0x4, scoped, tag = 'scoped memory for squeeze.569']
    #allocation2 [shape = 'u8[8192]{0}', space=vmem, size = 0x2000, scoped, tag = 'scoped mem for input reshape']
    %2 = vsyncpa [#allocation1], 0
    %s4 = sshllo.u32 0, 2
    %s5 = scalar_lea.vmem %s0, 2
    %v6 = vld [vmem:[%s5] sm:%s4]
    %s7 = scalar_lea.vmem [#allocation2], 8
    %8 = vst [vmem:[%s7] sm:%s4] %v6
    %v9 = vld [vmem:[%s0] sm:%s4]
    %10 = vst [vmem:[#allocation2] sm:%s4] %v9
    %v11 = vld [vmem:[#allocation2] sm:$0x3]
    %vm12 = vcmask 130048
    %13 = vst.msk [vmem:[#allocation0] ss:$16 sm:$0x3] %vm12, %v11
    %s14 = scalar_lea.vmem [#allocation2], 8
    %v15 = vld [vmem:[%s14] sm:$0x3]
    %vm16 = vcmask 130048
    %s17 = scalar_lea.vmem [#allocation0], 8
    %18 = vst.msk [vmem:[%s17] ss:$16 sm:$0x3] %vm16, %v15
    %v19 = vld.sshfl [vmem:[#allocation2] sm:$0xff pattern:$0x99999180]
    %20 = vrot.lane.b32.xlu0 %v19, 112
    %v21 = vpop.permute.xlu0 %20
    %vm22 = vcmask 130048
    %s23 = scalar_lea.vmem [#allocation0], 1
    %24 = vst.msk [vmem:[%s23] ss:$8 sm:$0xf] %vm22, %v21
    %v25 = vld.sshfl [vmem:[#allocation2] sm:$0xff pattern:$0x99999180]
    %26 = vrot.lane.b32.xlu0 %v25, 96
    %v27 = vpop.permute.xlu0 %26
    %vm28 = vcmask 130048
    %s29 = scalar_lea.vmem [#allocation0], 2
    %30 = vst.msk [vmem:[%s29] ss:$8 sm:$0xf] %vm28, %v27
    %v31 = vld.sshfl [vmem:[#allocation2] sm:$0xff pattern:$0x99999180]
    %32 = vrot.lane.b32.xlu0 %v31, 80
    %v33 = vpop.permute.xlu0 %32
    %vm34 = vcmask 130048
    %s35 = scalar_lea.vmem [#allocation0], 3
    %36 = vst.msk [vmem:[%s35] ss:$8 sm:$0xf] %vm34, %v33
    %v37 = vld.sshfl [vmem:[#allocation2] sm:$0xff pattern:$0x99999180]
    %38 = vrot.lane.b32.xlu0 %v37, 64
    %v39 = vpop.permute.xlu0 %38
    %vm40 = vcmask 130048
    %s41 = scalar_lea.vmem [#allocation0], 4
    %42 = vst.msk [vmem:[%s41] ss:$8 sm:$0xf] %vm40, %v39
    %v43 = vld.sshfl [vmem:[#allocation2] sm:$0xff pattern:$0x99999180]
    %44 = vrot.lane.b32.xlu0 %v43, 48
    %v45 = vpop.permute.xlu0 %44
    %vm46 = vcmask 130048
    %s47 = scalar_lea.vmem [#allocation0], 5
    %48 = vst.msk [vmem:[%s47] ss:$8 sm:$0xf] %vm46, %v45
    %v49 = vld.sshfl [vmem:[#allocation2] sm:$0xff pattern:$0x99999180]
    %50 = vrot.lane.b32.xlu0 %v49, 32
    %v51 = vpop.permute.xlu0 %50
    %vm52 = vcmask 130048
    %s53 = scalar_lea.vmem [#allocation0], 6
    %54 = vst.msk [vmem:[%s53] ss:$8 sm:$0xf] %vm52, %v51
    %v55 = vld.sshfl [vmem:[#allocation2] sm:$0xff pattern:$0x99999180]
    %56 = vrot.lane.b32.xlu0 %v55, 16
    %v57 = vpop.permute.xlu0 %56
    %vm58 = vcmask 130048
    %s59 = scalar_lea.vmem [#allocation0], 7
    %60 = vst.msk [vmem:[%s59] ss:$8 sm:$0xf] %vm58, %v57
    %s62 = ssub.s32 512, 512
    %63 = vsyncadd [#allocation1], %s62
    %s65 = sshll.u32 [#allocation0], 4
    %s66 = int_to_ptr.vmem [resolvable:$true] %s65
    %68 = dma.vmem_to_hbm [thread:$0]  %s66, 512, %s1, [#allocation1]
    %69 = dma.done [#allocation1], 512
    %70 = vsyncpa [#allocation1], 1

</llo_original>
